<compile_context>
chip_gen: v7x
topology: tpu7x:2x2x1
jax: 0.10.0
libtpu: 0.0.40
codegen_flags: <defaults>
</compile_context>

<pallas_src>
import jax
import jax.numpy as jnp
from jax import lax
from jax.scipy.linalg import block_diag
from jax.experimental import pallas as pl
from jax.experimental.pallas import tpu as pltpu

# Config stand-ins (the original Config class is not provided).
POS_CLASS = 5
SUFF_PLAYER_NUM = 10
HEAD_OUT_PAD = 128          # lane-dense padded width of the merged output head
HPAD = 128                  # per-gate lane slot / padded hidden width

_VMEM = pl.BlockSpec(memory_space=pltpu.MemorySpace.VMEM)


# ----------------------------------------------------------------------------
# Fused kernel: one hoisted input-projection matmul + one-matmul-per-step
# merged GRU recurrence + MLP head + merged output heads.
# Gate order = (r, z, n), matching torch.nn.GRU.
# ----------------------------------------------------------------------------
def fused_forward_kernel(x_ref, w_in_ref, b_in_ref, w_hh_ref, b_hh_n_ref,
                         w1_ref, b1_ref, w2_ref, b2_ref,
                         w3_ref, b3_ref, w4_ref, b4_ref,
                         wo_ref, bo_ref,
                         out_ref, gi_ref):
    T, Bp, Din = x_ref.shape
    G3 = 3 * HPAD

    # ---- hoisted input projection: ONE (T*Bp, Din) @ (Din, 3*HPAD) matmul for
    # all timesteps, both branches and all three gates (weights block-diag).
    x = x_ref[...].reshape(T * Bp, Din)
    gi = jnp.dot(x, w_in_ref[...],
                 preferred_element_type=jnp.float32) + b_in_ref[...]
    # Stage in VMEM so ~24 vregs of gi are not pinned across the unrolled loop.
    gi_ref[...] = gi.reshape(T, Bp, G3)

    b_hh_n = jnp.broadcast_to(b_hh_n_ref[...], (Bp, HPAD))   # hoisted broadcast

    # ---- fully-unrolled merged GRU recurrence: ONE matmul per step.
    h = jnp.zeros((Bp, HPAD), jnp.float32)
    for t in range(T):
        gi_t = gi_ref[t]                                      # (Bp, 3*HPAD)
        gh = jnp.dot(h, w_hh_ref[...],                        # (Bp, 3*HPAD)
                     preferred_element_type=jnp.float32)
        # lane-tile-aligned static slices (one vreg group per gate)
        r = jax.nn.sigmoid(gi_t[:, :HPAD] + gh[:, :HPAD])
        z = jax.nn.sigmoid(gi_t[:, HPAD:2 * HPAD] + gh[:, HPAD:2 * HPAD])
        n = jnp.tanh(gi_t[:, 2 * HPAD:] + r * (gh[:, 2 * HPAD:] + b_hh_n))
        h = n + z * (h - n)

    # ---- MLP head.  h (lane-padded with zeros) == concat(h_team, h_player).
    def relu_lin(a, w_ref, b_ref):
        return jnp.maximum(
            jnp.dot(a, w_ref[...], preferred_element_type=jnp.float32)
            + b_ref[...], 0.0)

    a = relu_lin(h, w1_ref, b1_ref)
    a = relu_lin(a, w2_ref, b2_ref)
    a = relu_lin(a, w3_ref, b3_ref)
    a = relu_lin(a, w4_ref, b4_ref)
    out_ref[...] = (jnp.dot(a, wo_ref[...], preferred_element_type=jnp.float32)
                    + bo_ref[...])


# ----------------------------------------------------------------------------
# Parameter construction (deterministic, PyTorch-style uniform init).
# Weights are stored pre-transposed as (in_features, out_features).
# ----------------------------------------------------------------------------
def linear_params(key, fan_in, fan_out):
    k = 1.0 / float(fan_in) ** 0.5
    kw, kb = jax.random.split(key)
    W = jax.random.uniform(kw, (fan_in, fan_out), jnp.float32, -k, k)
    b = jax.random.uniform(kb, (1, fan_out), jnp.float32, -k, k)
    return W, b


def gru_params(key, in_size, hidden):
    k = 1.0 / float(hidden) ** 0.5
    k1, k2, k3, k4 = jax.random.split(key, 4)
    wih = jax.random.uniform(k1, (in_size, 3 * hidden), jnp.float32, -k, k)
    whh = jax.random.uniform(k2, (hidden, 3 * hidden), jnp.float32, -k, k)
    bih = jax.random.uniform(k3, (1, 3 * hidden), jnp.float32, -k, k)
    bhh = jax.random.uniform(k4, (1, 3 * hidden), jnp.float32, -k, k)
    return wih, whh, bih, bhh


def make_branch_params(key, input_size, hidden_size):
    k1, k2 = jax.random.split(key)
    wfc, bfc = linear_params(k1, input_size, 16)
    wih, whh, bih, bhh = gru_params(k2, 16, hidden_size)
    return (wfc, bfc, wih, bih, whh, bhh)


def make_head_params(key, concat_size):
    ks = jax.random.split(key, 6)
    return [
        linear_params(ks[0], concat_size, 128),
        linear_params(ks[1], 128, 64),
        linear_params(ks[2], 64, 32),
        linear_params(ks[3], 32, 16),
        linear_params(ks[4], 16, POS_CLASS),
        linear_params(ks[5], 16, SUFF_PLAYER_NUM),
    ]


# ----------------------------------------------------------------------------
# One-time parameter packing for the fused kernel.
#   * fc1 folded into the GRU input projection:  x @ (wfc@wih_g) + ...
#   * bhh_{r,z} folded into the input bias (purely additive for r,z gates).
#   * team/player branches merged via block-diagonal weights.
#   * each gate padded to its own 128-lane slot -> tile-aligned gate slices.
# ----------------------------------------------------------------------------
def pack_params(params):
    wfc_t, bfc_t, wih_t, bih_t, whh_t, bhh_t = params["team"]
    wfc_p, bfc_p, wih_p, bih_p, whh_p, bhh_p = params["player"]
    Ht = whh_t.shape[0]
    Hp = whh_p.shape[0]
    Htot = Ht + Hp
    Dt = wfc_t.shape[0]
    Dp = wfc_p.shape[0]
    Din = Dt + Dp
    assert Htot <= HPAD

    def gate(m, g, H):
        return m[:, g * H:(g + 1) * H]

    # Packed, block-diagonal input projection (one matmul for everything).
    w_in = jnp.zeros((Din, 3 * HPAD), jnp.float32)
    b_in = jnp.zeros((1, 3 * HPAD), jnp.float32)
    for g in range(3):
        wt = wfc_t @ gate(wih_t, g, Ht)                       # (Dt, Ht)
        wp = wfc_p @ gate(wih_p, g, Hp)                       # (Dp, Hp)
        w_in = w_in.at[:Dt, g * HPAD:g * HPAD + Ht].set(wt)
        w_in = w_in.at[Dt:, g * HPAD + Ht:g * HPAD + Htot].set(wp)
        bt = bfc_t @ gate(wih_t, g, Ht) + gate(bih_t, g, Ht)
        bp = bfc_p @ gate(wih_p, g, Hp) + gate(bih_p, g, Hp)
        if g < 2:   # r, z gates: recurrent bias is purely additive -> fold it
            bt = bt + gate(bhh_t, g, Ht)
            bp = bp + gate(bhh_p, g, Hp)
        b_in = b_in.at[:, g * HPAD:g * HPAD + Ht].set(bt)
        b_in = b_in.at[:, g * HPAD + Ht:g * HPAD + Htot].set(bp)

    # Packed recurrent weight: ONE (HPAD, 3*HPAD) matmul per step.
    w_hh = jnp.zeros((HPAD, 3 * HPAD), jnp.float32)
    for g in range(3):
        blk = block_diag(gate(whh_t, g, Ht), gate(whh_p, g, Hp))  # (Htot,Htot)
        w_hh = w_hh.at[:Htot, g * HPAD:g * HPAD + Htot].set(blk)

    b_hh_n = (jnp.zeros((1, HPAD), jnp.float32)
              .at[:, :Ht].set(gate(bhh_t, 2, Ht))
              .at[:, Ht:Htot].set(gate(bhh_p, 2, Hp)))

    # Head: pad fc1 rows to HPAD (zero rows for padded h lanes are exact);
    # merge + pad the two output heads to a lane-dense 128-wide slab.
    (w1, b1), (w2, b2), (w3, b3), (w4, b4), (wp_, bp_), (wq, bq) = params["head"]
    w1p = jnp.pad(w1, ((0, HPAD - Htot), (0, 0)))
    n_out = POS_CLASS + SUFF_PLAYER_NUM
    wo = jnp.pad(jnp.concatenate([wp_, wq], axis=1),
                 ((0, 0), (0, HEAD_OUT_PAD - n_out)))             # (16,128)
    bo = jnp.pad(jnp.concatenate([bp_, bq], axis=1),
                 ((0, 0), (0, HEAD_OUT_PAD - n_out)))             # (1,128)

    return {
        "w_in": w_in, "b_in": b_in, "w_hh": w_hh, "b_hh_n": b_hh_n,
        "head": (w1p, b1, w2, b2, w3, b3, w4, b4, wo, bo),
    }


# ----------------------------------------------------------------------------
# Full module forward (mirrors PlayerClassifyNetwork.forward), single kernel.
# ----------------------------------------------------------------------------
@jax.jit
def player_classify_forward(packed, team_seq, team_seq_len, stat_team,
                            player_seq, player_seq_len, stat_player):
    del team_seq_len, player_seq_len, stat_team, stat_player  # unused (as in torch)
    B, Tt, Dt = team_seq.shape
    _, Tp, Dp = player_seq.shape
    # TODO(synk): the block-diagonal branch fusion assumes equal sequence lengths.
    assert Tt == Tp, "fused kernel requires team/player sequences of equal length"
    T = Tt
    Din = Dt + Dp
    Bp = max(8, ((B + 7) // 8) * 8)           # pad batch to a full sublane tile

    # Concatenate features once, pad batch, and go time-major (tiny XLA ops).
    x = jnp.concatenate([team_seq.astype(jnp.float32),
                         player_seq.astype(jnp.float32)], axis=2)   # (B,T,Din)
    x = jnp.pad(x, ((0, Bp - B), (0, 0), (0, 0)))
    x = jnp.transpose(x, (1, 0, 2))                                 # (T,Bp,Din)

    flops = (2 * T * Bp * Din * 3 * HPAD            # hoisted input projection
             + 2 * T * Bp * HPAD * 3 * HPAD         # recurrence
             + 2 * Bp * (HPAD * 128 + 128 * 64 + 64 * 32
                         + 32 * 16 + 16 * HEAD_OUT_PAD))            # head
    transcendentals = 3 * T * Bp * HPAD

    args = (x, packed["w_in"], packed["b_in"], packed["w_hh"],
            packed["b_hh_n"], *packed["head"])
    bytes_accessed = sum(int(a.size) * 4 for a in args) + Bp * HEAD_OUT_PAD * 4

    out = pl.pallas_call(
        fused_forward_kernel,
        out_shape=jax.ShapeDtypeStruct((Bp, HEAD_OUT_PAD), jnp.float32),
        in_specs=[_VMEM] * len(args),
        out_specs=_VMEM,
        scratch_shapes=[pltpu.VMEM((T, Bp, 3 * HPAD), jnp.float32)],
        cost_estimate=pl.CostEstimate(flops=flops,
                                      transcendentals=transcendentals,
                                      bytes_accessed=bytes_accessed),
    )(*args)

    out_pos = out[:B, :POS_CLASS]
    out_player = out[:B, POS_CLASS:POS_CLASS + SUFF_PLAYER_NUM]
    return [out_pos, out_player]


# ----------------------------------------------------------------------------
# Pure-JAX reference (unfused, mirrors the torch module exactly).
# ----------------------------------------------------------------------------
def ref_branch(x, params):
    wfc, bfc, wih, bih, whh, bhh = params
    H = whh.shape[0]
    p = x.astype(jnp.float32) @ wfc + bfc  # (B, T, 16)

    def step(h, p_t):
        gi = p_t @ wih + bih
        gh = h @ whh + bhh
        r = jax.nn.sigmoid(gi[:, :H] + gh[:, :H])
        z = jax.nn.sigmoid(gi[:, H:2 * H] + gh[:, H:2 * H])
        n = jnp.tanh(gi[:, 2 * H:] + r * gh[:, 2 * H:])
        h = (1.0 - z) * n + z * h
        return h, None

    h0 = jnp.zeros((x.shape[0], H), jnp.float32)
    h_fin, _ = lax.scan(step, h0, jnp.transpose(p, (1, 0, 2)))
    return h_fin


def ref_forward(params, team_seq, player_seq):
    h = jnp.concatenate(
        [ref_branch(team_seq, params["team"]),
         ref_branch(player_seq, params["player"])], axis=1)
    (w1, b1), (w2, b2), (w3, b3), (w4, b4), (wp, bp), (wq, bq) = params["head"]
    h = jnp.maximum(h @ w1 + b1, 0)
    h = jnp.maximum(h @ w2 + b2, 0)
    h = jnp.maximum(h @ w3 + b3, 0)
    h = jnp.maximum(h @ w4 + b4, 0)
    return [h @ wp + bp, h @ wq + bq]


if __name__ == "__main__":
    # Small, module-consistent shapes.
    B = 2
    T_TEAM, T_PLAYER = 8, 8
    TEAM_INPUT, TEAM_HIDDEN = 6, 32
    PLAYER_INPUT, PLAYER_HIDDEN = 4, 32
    TEAM_STAT_DIM, PLAYER_STAT_DIM = 3, 3

    root = jax.random.PRNGKey(0)
    k_params, k_team, k_player, k_st, k_sp = jax.random.split(root, 5)
    kp_team, kp_player, kp_head = jax.random.split(k_params, 3)

    params = {
        "team": make_branch_params(kp_team, TEAM_INPUT, TEAM_HIDDEN),
        "player": make_branch_params(kp_player, PLAYER_INPUT, PLAYER_HIDDEN),
        "head": make_head_params(kp_head, TEAM_HIDDEN + PLAYER_HIDDEN),
    }
    packed = pack_params(params)   # one-time weight folding / packing / padding

    team_seq = jax.random.normal(k_team, (B, T_TEAM, TEAM_INPUT), jnp.float32)
    player_seq = jax.random.normal(k_player, (B, T_PLAYER, PLAYER_INPUT),
                                   jnp.float32)
    team_seq_len = jnp.full((B,), T_TEAM, jnp.int32)
    player_seq_len = jnp.full((B,), T_PLAYER, jnp.int32)
    stat_team = jax.random.normal(k_st, (B, TEAM_STAT_DIM), jnp.float32)
    stat_player = jax.random.normal(k_sp, (B, PLAYER_STAT_DIM), jnp.float32)

    out_pos, out_player = player_classify_forward(
        packed, team_seq, team_seq_len, stat_team,
        player_seq, player_seq_len, stat_player)
    jax.block_until_ready((out_pos, out_player))

    # Verify against pure-JAX reference (weight pre-folding introduces small,
    # benign f32 reassociation differences).
    ref_pos, ref_player = ref_forward(params, team_seq, player_seq)
    assert out_pos.shape == (B, POS_CLASS)
    assert out_player.shape == (B, SUFF_PLAYER_NUM)
    assert jnp.allclose(out_pos, ref_pos, atol=5e-4, rtol=5e-4)
    assert jnp.allclose(out_player, ref_player, atol=5e-4, rtol=5e-4)

    print("KERNEL_OK")
</pallas_src>

<mosaic_0001>
module attributes {stable_mosaic.version = 11 : i64} {
  func.func @fused_forward_kernel(%arg0: memref<8x8x10xf32, #tpu.memory_space<vmem>>, %arg1: memref<10x384xf32, #tpu.memory_space<vmem>>, %arg2: memref<1x384xf32, #tpu.memory_space<vmem>>, %arg3: memref<128x384xf32, #tpu.memory_space<vmem>>, %arg4: memref<1x128xf32, #tpu.memory_space<vmem>>, %arg5: memref<128x128xf32, #tpu.memory_space<vmem>>, %arg6: memref<1x128xf32, #tpu.memory_space<vmem>>, %arg7: memref<128x64xf32, #tpu.memory_space<vmem>>, %arg8: memref<1x64xf32, #tpu.memory_space<vmem>>, %arg9: memref<64x32xf32, #tpu.memory_space<vmem>>, %arg10: memref<1x32xf32, #tpu.memory_space<vmem>>, %arg11: memref<32x16xf32, #tpu.memory_space<vmem>>, %arg12: memref<1x16xf32, #tpu.memory_space<vmem>>, %arg13: memref<16x128xf32, #tpu.memory_space<vmem>>, %arg14: memref<1x128xf32, #tpu.memory_space<vmem>>, %arg15: memref<8x128xf32, #tpu.memory_space<vmem>>, %arg16: memref<8x8x384xf32, #tpu.memory_space<vmem>>) attributes {dimension_semantics = [], scalar_prefetch = 0 : i64, scratch_operands = 1 : i64, tpu.core_type = #tpu.core_type<tc>} {
    %c0 = arith.constant 0 : index
    %c0_0 = arith.constant 0 : index
    %c0_1 = arith.constant 0 : index
    %0 = vector.load %arg0[%c0, %c0_0, %c0_1] : memref<8x8x10xf32, #tpu.memory_space<vmem>>, vector<8x8x10xf32>
    %1 = vector.shape_cast %0 : vector<8x8x10xf32> to vector<64x10xf32>
    %c0_2 = arith.constant 0 : index
    %c0_3 = arith.constant 0 : index
    %2 = vector.load %arg1[%c0_2, %c0_3] : memref<10x384xf32, #tpu.memory_space<vmem>>, vector<10x384xf32>
    %cst = arith.constant dense<0.000000e+00> : vector<64x384xf32>
    %3 = tpu.matmul %1, %2, %cst {dimension_numbers = #tpu.dot_dimension_numbers<[1], [0], [0], [1], [0, 0, 1, 1], [], []>} : vector<64x10xf32>, vector<10x384xf32>, vector<64x384xf32> -> vector<64x384xf32>
    %c0_4 = arith.constant 0 : index
    %c0_5 = arith.constant 0 : index
    %4 = vector.load %arg2[%c0_4, %c0_5] : memref<1x384xf32, #tpu.memory_space<vmem>>, vector<1x384xf32>
    %5 = vector.broadcast %4 : vector<1x384xf32> to vector<64x384xf32>
    %6 = arith.addf %3, %5 : vector<64x384xf32>
    %7 = vector.shape_cast %6 : vector<64x384xf32> to vector<8x8x384xf32>
    %c0_6 = arith.constant 0 : index
    %c0_7 = arith.constant 0 : index
    %c0_8 = arith.constant 0 : index
    %8 = vector.load %arg16[%c0_6, %c0_7, %c0_8] : memref<8x8x384xf32, #tpu.memory_space<vmem>>, vector<8x8x384xf32>
    tpu.vector_store %arg16[%c0_6, %c0_7, %c0_8], %7 {strides = array<i32>} : memref<8x8x384xf32, #tpu.memory_space<vmem>>, vector<8x8x384xf32>,
    %c0_9 = arith.constant 0 : index
    %c0_10 = arith.constant 0 : index
    %9 = vector.load %arg4[%c0_9, %c0_10] : memref<1x128xf32, #tpu.memory_space<vmem>>, vector<1x128xf32>
    %10 = vector.shape_cast %9 : vector<1x128xf32> to vector<1x128xf32>
    %11 = vector.broadcast %10 : vector<1x128xf32> to vector<8x128xf32>
    %cst_11 = arith.constant 0.000000e+00 : f32
    %12 = vector.broadcast %cst_11 : f32 to vector<8x128xf32>
    %c0_12 = arith.constant 0 : index
    %c0_13 = arith.constant 0 : index
    %c0_14 = arith.constant 0 : index
    %13 = vector.load %arg16[%c0_12, %c0_13, %c0_14] : memref<8x8x384xf32, #tpu.memory_space<vmem>>, vector<1x8x384xf32>
    %14 = vector.shape_cast %13 : vector<1x8x384xf32> to vector<8x384xf32>
    %c0_15 = arith.constant 0 : index
    %c0_16 = arith.constant 0 : index
    %15 = vector.load %arg3[%c0_15, %c0_16] : memref<128x384xf32, #tpu.memory_space<vmem>>, vector<128x384xf32>
    %cst_17 = arith.constant dense<0.000000e+00> : vector<8x384xf32>
    %16 = tpu.matmul %12, %15, %cst_17 {dimension_numbers = #tpu.dot_dimension_numbers<[1], [0], [0], [1], [0, 0, 1, 1], [], []>} : vector<8x128xf32>, vector<128x384xf32>, vector<8x384xf32> -> vector<8x384xf32>
    %17 = vector.extract_strided_slice %14 {offsets = [0, 0], sizes = [8, 128], strides = [1, 1]} : vector<8x384xf32> to vector<8x128xf32>
    %18 = vector.extract_strided_slice %16 {offsets = [0, 0], sizes = [8, 128], strides = [1, 1]} : vector<8x384xf32> to vector<8x128xf32>
    %19 = arith.addf %17, %18 : vector<8x128xf32>
    %20 = arith.negf %19 : vector<8x128xf32>
    %21 = math.exp %20 : vector<8x128xf32>
    %cst_18 = arith.constant 1.000000e+00 : f32
    %22 = vector.broadcast %cst_18 : f32 to vector<8x128xf32>
    %23 = arith.addf %22, %21 : vector<8x128xf32>
    %24 = arith.divf %22, %23 : vector<8x128xf32>
    %25 = vector.extract_strided_slice %14 {offsets = [0, 128], sizes = [8, 128], strides = [1, 1]} : vector<8x384xf32> to vector<8x128xf32>
    %26 = vector.extract_strided_slice %16 {offsets = [0, 128], sizes = [8, 128], strides = [1, 1]} : vector<8x384xf32> to vector<8x128xf32>
    %27 = arith.addf %25, %26 : vector<8x128xf32>
    %28 = arith.negf %27 : vector<8x128xf32>
    %29 = math.exp %28 : vector<8x128xf32>
    %cst_19 = arith.constant 1.000000e+00 : f32
    %30 = vector.broadcast %cst_19 : f32 to vector<8x128xf32>
    %31 = arith.addf %30, %29 : vector<8x128xf32>
    %32 = arith.divf %30, %31 : vector<8x128xf32>
    %33 = vector.extract_strided_slice %14 {offsets = [0, 256], sizes = [8, 128], strides = [1, 1]} : vector<8x384xf32> to vector<8x128xf32>
    %34 = vector.extract_strided_slice %16 {offsets = [0, 256], sizes = [8, 128], strides = [1, 1]} : vector<8x384xf32> to vector<8x128xf32>
    %35 = arith.addf %34, %11 : vector<8x128xf32>
    %36 = arith.mulf %24, %35 : vector<8x128xf32>
    %37 = arith.addf %33, %36 : vector<8x128xf32>
    %38 = math.tanh %37 : vector<8x128xf32>
    %39 = arith.subf %12, %38 : vector<8x128xf32>
    %40 = arith.mulf %32, %39 : vector<8x128xf32>
    %41 = arith.addf %38, %40 : vector<8x128xf32>
    %c1 = arith.constant 1 : index
    %c0_20 = arith.constant 0 : index
    %c0_21 = arith.constant 0 : index
    %42 = vector.load %arg16[%c1, %c0_20, %c0_21] : memref<8x8x384xf32, #tpu.memory_space<vmem>>, vector<1x8x384xf32>
    %43 = vector.shape_cast %42 : vector<1x8x384xf32> to vector<8x384xf32>
    %c0_22 = arith.constant 0 : index
    %c0_23 = arith.constant 0 : index
    %44 = vector.load %arg3[%c0_22, %c0_23] : memref<128x384xf32, #tpu.memory_space<vmem>>, vector<128x384xf32>
    %cst_24 = arith.constant dense<0.000000e+00> : vector<8x384xf32>
    %45 = tpu.matmul %41, %44, %cst_24 {dimension_numbers = #tpu.dot_dimension_numbers<[1], [0], [0], [1], [0, 0, 1, 1], [], []>} : vector<8x128xf32>, vector<128x384xf32>, vector<8x384xf32> -> vector<8x384xf32>
    %46 = vector.extract_strided_slice %43 {offsets = [0, 0], sizes = [8, 128], strides = [1, 1]} : vector<8x384xf32> to vector<8x128xf32>
    %47 = vector.extract_strided_slice %45 {offsets = [0, 0], sizes = [8, 128], strides = [1, 1]} : vector<8x384xf32> to vector<8x128xf32>
    %48 = arith.addf %46, %47 : vector<8x128xf32>
    %49 = arith.negf %48 : vector<8x128xf32>
    %50 = math.exp %49 : vector<8x128xf32>
    %cst_25 = arith.constant 1.000000e+00 : f32
    %51 = vector.broadcast %cst_25 : f32 to vector<8x128xf32>
    %52 = arith.addf %51, %50 : vector<8x128xf32>
    %53 = arith.divf %51, %52 : vector<8x128xf32>
    %54 = vector.extract_strided_slice %43 {offsets = [0, 128], sizes = [8, 128], strides = [1, 1]} : vector<8x384xf32> to vector<8x128xf32>
    %55 = vector.extract_strided_slice %45 {offsets = [0, 128], sizes = [8, 128], strides = [1, 1]} : vector<8x384xf32> to vector<8x128xf32>
    %56 = arith.addf %54, %55 : vector<8x128xf32>
    %57 = arith.negf %56 : vector<8x128xf32>
    %58 = math.exp %57 : vector<8x128xf32>
    %cst_26 = arith.constant 1.000000e+00 : f32
    %59 = vector.broadcast %cst_26 : f32 to vector<8x128xf32>
    %60 = arith.addf %59, %58 : vector<8x128xf32>
    %61 = arith.divf %59, %60 : vector<8x128xf32>
    %62 = vector.extract_strided_slice %43 {offsets = [0, 256], sizes = [8, 128], strides = [1, 1]} : vector<8x384xf32> to vector<8x128xf32>
    %63 = vector.extract_strided_slice %45 {offsets = [0, 256], sizes = [8, 128], strides = [1, 1]} : vector<8x384xf32> to vector<8x128xf32>
    %64 = arith.addf %63, %11 : vector<8x128xf32>
    %65 = arith.mulf %53, %64 : vector<8x128xf32>
    %66 = arith.addf %62, %65 : vector<8x128xf32>
    %67 = math.tanh %66 : vector<8x128xf32>
    %68 = arith.subf %41, %67 : vector<8x128xf32>
    %69 = arith.mulf %61, %68 : vector<8x128xf32>
    %70 = arith.addf %67, %69 : vector<8x128xf32>
    %c2 = arith.constant 2 : index
    %c0_27 = arith.constant 0 : index
    %c0_28 = arith.constant 0 : index
    %71 = vector.load %arg16[%c2, %c0_27, %c0_28] : memref<8x8x384xf32, #tpu.memory_space<vmem>>, vector<1x8x384xf32>
    %72 = vector.shape_cast %71 : vector<1x8x384xf32> to vector<8x384xf32>
    %c0_29 = arith.constant 0 : index
    %c0_30 = arith.constant 0 : index
    %73 = vector.load %arg3[%c0_29, %c0_30] : memref<128x384xf32, #tpu.memory_space<vmem>>, vector<128x384xf32>
    %cst_31 = arith.constant dense<0.000000e+00> : vector<8x384xf32>
    %74 = tpu.matmul %70, %73, %cst_31 {dimension_numbers = #tpu.dot_dimension_numbers<[1], [0], [0], [1], [0, 0, 1, 1], [], []>} : vector<8x128xf32>, vector<128x384xf32>, vector<8x384xf32> -> vector<8x384xf32>
    %75 = vector.extract_strided_slice %72 {offsets = [0, 0], sizes = [8, 128], strides = [1, 1]} : vector<8x384xf32> to vector<8x128xf32>
    %76 = vector.extract_strided_slice %74 {offsets = [0, 0], sizes = [8, 128], strides = [1, 1]} : vector<8x384xf32> to vector<8x128xf32>
    %77 = arith.addf %75, %76 : vector<8x128xf32>
    %78 = arith.negf %77 : vector<8x128xf32>
    %79 = math.exp %78 : vector<8x128xf32>
    %cst_32 = arith.constant 1.000000e+00 : f32
    %80 = vector.broadcast %cst_32 : f32 to vector<8x128xf32>
    %81 = arith.addf %80, %79 : vector<8x128xf32>
    %82 = arith.divf %80, %81 : vector<8x128xf32>
    %83 = vector.extract_strided_slice %72 {offsets = [0, 128], sizes = [8, 128], strides = [1, 1]} : vector<8x384xf32> to vector<8x128xf32>
    %84 = vector.extract_strided_slice %74 {offsets = [0, 128], sizes = [8, 128], strides = [1, 1]} : vector<8x384xf32> to vector<8x128xf32>
    %85 = arith.addf %83, %84 : vector<8x128xf32>
    %86 = arith.negf %85 : vector<8x128xf32>
    %87 = math.exp %86 : vector<8x128xf32>
    %cst_33 = arith.constant 1.000000e+00 : f32
    %88 = vector.broadcast %cst_33 : f32 to vector<8x128xf32>
    %89 = arith.addf %88, %87 : vector<8x128xf32>
    %90 = arith.divf %88, %89 : vector<8x128xf32>
    %91 = vector.extract_strided_slice %72 {offsets = [0, 256], sizes = [8, 128], strides = [1, 1]} : vector<8x384xf32> to vector<8x128xf32>
    %92 = vector.extract_strided_slice %74 {offsets = [0, 256], sizes = [8, 128], strides = [1, 1]} : vector<8x384xf32> to vector<8x128xf32>
    %93 = arith.addf %92, %11 : vector<8x128xf32>
    %94 = arith.mulf %82, %93 : vector<8x128xf32>
    %95 = arith.addf %91, %94 : vector<8x128xf32>
    %96 = math.tanh %95 : vector<8x128xf32>
    %97 = arith.subf %70, %96 : vector<8x128xf32>
    %98 = arith.mulf %90, %97 : vector<8x128xf32>
    %99 = arith.addf %96, %98 : vector<8x128xf32>
    %c3 = arith.constant 3 : index
    %c0_34 = arith.constant 0 : index
    %c0_35 = arith.constant 0 : index
    %100 = vector.load %arg16[%c3, %c0_34, %c0_35] : memref<8x8x384xf32, #tpu.memory_space<vmem>>, vector<1x8x384xf32>
    %101 = vector.shape_cast %100 : vector<1x8x384xf32> to vector<8x384xf32>
    %c0_36 = arith.constant 0 : index
    %c0_37 = arith.constant 0 : index
    %102 = vector.load %arg3[%c0_36, %c0_37] : memref<128x384xf32, #tpu.memory_space<vmem>>, vector<128x384xf32>
    %cst_38 = arith.constant dense<0.000000e+00> : vector<8x384xf32>
    %103 = tpu.matmul %99, %102, %cst_38 {dimension_numbers = #tpu.dot_dimension_numbers<[1], [0], [0], [1], [0, 0, 1, 1], [], []>} : vector<8x128xf32>, vector<128x384xf32>, vector<8x384xf32> -> vector<8x384xf32>
    %104 = vector.extract_strided_slice %101 {offsets = [0, 0], sizes = [8, 128], strides = [1, 1]} : vector<8x384xf32> to vector<8x128xf32>
    %105 = vector.extract_strided_slice %103 {offsets = [0, 0], sizes = [8, 128], strides = [1, 1]} : vector<8x384xf32> to vector<8x128xf32>
    %106 = arith.addf %104, %105 : vector<8x128xf32>
    %107 = arith.negf %106 : vector<8x128xf32>
    %108 = math.exp %107 : vector<8x128xf32>
    %cst_39 = arith.constant 1.000000e+00 : f32
    %109 = vector.broadcast %cst_39 : f32 to vector<8x128xf32>
    %110 = arith.addf %109, %108 : vector<8x128xf32>
    %111 = arith.divf %109, %110 : vector<8x128xf32>
    %112 = vector.extract_strided_slice %101 {offsets = [0, 128], sizes = [8, 128], strides = [1, 1]} : vector<8x384xf32> to vector<8x128xf32>
    %113 = vector.extract_strided_slice %103 {offsets = [0, 128], sizes = [8, 128], strides = [1, 1]} : vector<8x384xf32> to vector<8x128xf32>
    %114 = arith.addf %112, %113 : vector<8x128xf32>
    %115 = arith.negf %114 : vector<8x128xf32>
    %116 = math.exp %115 : vector<8x128xf32>
    %cst_40 = arith.constant 1.000000e+00 : f32
    %117 = vector.broadcast %cst_40 : f32 to vector<8x128xf32>
    %118 = arith.addf %117, %116 : vector<8x128xf32>
    %119 = arith.divf %117, %118 : vector<8x128xf32>
    %120 = vector.extract_strided_slice %101 {offsets = [0, 256], sizes = [8, 128], strides = [1, 1]} : vector<8x384xf32> to vector<8x128xf32>
    %121 = vector.extract_strided_slice %103 {offsets = [0, 256], sizes = [8, 128], strides = [1, 1]} : vector<8x384xf32> to vector<8x128xf32>
    %122 = arith.addf %121, %11 : vector<8x128xf32>
    %123 = arith.mulf %111, %122 : vector<8x128xf32>
    %124 = arith.addf %120, %123 : vector<8x128xf32>
    %125 = math.tanh %124 : vector<8x128xf32>
    %126 = arith.subf %99, %125 : vector<8x128xf32>
    %127 = arith.mulf %119, %126 : vector<8x128xf32>
    %128 = arith.addf %125, %127 : vector<8x128xf32>
    %c4 = arith.constant 4 : index
    %c0_41 = arith.constant 0 : index
    %c0_42 = arith.constant 0 : index
    %129 = vector.load %arg16[%c4, %c0_41, %c0_42] : memref<8x8x384xf32, #tpu.memory_space<vmem>>, vector<1x8x384xf32>
    %130 = vector.shape_cast %129 : vector<1x8x384xf32> to vector<8x384xf32>
    %c0_43 = arith.constant 0 : index
    %c0_44 = arith.constant 0 : index
    %131 = vector.load %arg3[%c0_43, %c0_44] : memref<128x384xf32, #tpu.memory_space<vmem>>, vector<128x384xf32>
    %cst_45 = arith.constant dense<0.000000e+00> : vector<8x384xf32>
    %132 = tpu.matmul %128, %131, %cst_45 {dimension_numbers = #tpu.dot_dimension_numbers<[1], [0], [0], [1], [0, 0, 1, 1], [], []>} : vector<8x128xf32>, vector<128x384xf32>, vector<8x384xf32> -> vector<8x384xf32>
    %133 = vector.extract_strided_slice %130 {offsets = [0, 0], sizes = [8, 128], strides = [1, 1]} : vector<8x384xf32> to vector<8x128xf32>
    %134 = vector.extract_strided_slice %132 {offsets = [0, 0], sizes = [8, 128], strides = [1, 1]} : vector<8x384xf32> to vector<8x128xf32>
    %135 = arith.addf %133, %134 : vector<8x128xf32>
    %136 = arith.negf %135 : vector<8x128xf32>
    %137 = math.exp %136 : vector<8x128xf32>
    %cst_46 = arith.constant 1.000000e+00 : f32
    %138 = vector.broadcast %cst_46 : f32 to vector<8x128xf32>
    %139 = arith.addf %138, %137 : vector<8x128xf32>
    %140 = arith.divf %138, %139 : vector<8x128xf32>
    %141 = vector.extract_strided_slice %130 {offsets = [0, 128], sizes = [8, 128], strides = [1, 1]} : vector<8x384xf32> to vector<8x128xf32>
    %142 = vector.extract_strided_slice %132 {offsets = [0, 128], sizes = [8, 128], strides = [1, 1]} : vector<8x384xf32> to vector<8x128xf32>
    %143 = arith.addf %141, %142 : vector<8x128xf32>
    %144 = arith.negf %143 : vector<8x128xf32>
    %145 = math.exp %144 : vector<8x128xf32>
    %cst_47 = arith.constant 1.000000e+00 : f32
    %146 = vector.broadcast %cst_47 : f32 to vector<8x128xf32>
    %147 = arith.addf %146, %145 : vector<8x128xf32>
    %148 = arith.divf %146, %147 : vector<8x128xf32>
    %149 = vector.extract_strided_slice %130 {offsets = [0, 256], sizes = [8, 128], strides = [1, 1]} : vector<8x384xf32> to vector<8x128xf32>
    %150 = vector.extract_strided_slice %132 {offsets = [0, 256], sizes = [8, 128], strides = [1, 1]} : vector<8x384xf32> to vector<8x128xf32>
    %151 = arith.addf %150, %11 : vector<8x128xf32>
    %152 = arith.mulf %140, %151 : vector<8x128xf32>
    %153 = arith.addf %149, %152 : vector<8x128xf32>
    %154 = math.tanh %153 : vector<8x128xf32>
    %155 = arith.subf %128, %154 : vector<8x128xf32>
    %156 = arith.mulf %148, %155 : vector<8x128xf32>
    %157 = arith.addf %154, %156 : vector<8x128xf32>
    %c5 = arith.constant 5 : index
    %c0_48 = arith.constant 0 : index
    %c0_49 = arith.constant 0 : index
    %158 = vector.load %arg16[%c5, %c0_48, %c0_49] : memref<8x8x384xf32, #tpu.memory_space<vmem>>, vector<1x8x384xf32>
    %159 = vector.shape_cast %158 : vector<1x8x384xf32> to vector<8x384xf32>
    %c0_50 = arith.constant 0 : index
    %c0_51 = arith.constant 0 : index
    %160 = vector.load %arg3[%c0_50, %c0_51] : memref<128x384xf32, #tpu.memory_space<vmem>>, vector<128x384xf32>
    %cst_52 = arith.constant dense<0.000000e+00> : vector<8x384xf32>
    %161 = tpu.matmul %157, %160, %cst_52 {dimension_numbers = #tpu.dot_dimension_numbers<[1], [0], [0], [1], [0, 0, 1, 1], [], []>} : vector<8x128xf32>, vector<128x384xf32>, vector<8x384xf32> -> vector<8x384xf32>
    %162 = vector.extract_strided_slice %159 {offsets = [0, 0], sizes = [8, 128], strides = [1, 1]} : vector<8x384xf32> to vector<8x128xf32>
    %163 = vector.extract_strided_slice %161 {offsets = [0, 0], sizes = [8, 128], strides = [1, 1]} : vector<8x384xf32> to vector<8x128xf32>
    %164 = arith.addf %162, %163 : vector<8x128xf32>
    %165 = arith.negf %164 : vector<8x128xf32>
    %166 = math.exp %165 : vector<8x128xf32>
    %cst_53 = arith.constant 1.000000e+00 : f32
    %167 = vector.broadcast %cst_53 : f32 to vector<8x128xf32>
    %168 = arith.addf %167, %166 : vector<8x128xf32>
    %169 = arith.divf %167, %168 : vector<8x128xf32>
    %170 = vector.extract_strided_slice %159 {offsets = [0, 128], sizes = [8, 128], strides = [1, 1]} : vector<8x384xf32> to vector<8x128xf32>
    %171 = vector.extract_strided_slice %161 {offsets = [0, 128], sizes = [8, 128], strides = [1, 1]} : vector<8x384xf32> to vector<8x128xf32>
    %172 = arith.addf %170, %171 : vector<8x128xf32>
    %173 = arith.negf %172 : vector<8x128xf32>
    %174 = math.exp %173 : vector<8x128xf32>
    %cst_54 = arith.constant 1.000000e+00 : f32
    %175 = vector.broadcast %cst_54 : f32 to vector<8x128xf32>
    %176 = arith.addf %175, %174 : vector<8x128xf32>
    %177 = arith.divf %175, %176 : vector<8x128xf32>
    %178 = vector.extract_strided_slice %159 {offsets = [0, 256], sizes = [8, 128], strides = [1, 1]} : vector<8x384xf32> to vector<8x128xf32>
    %179 = vector.extract_strided_slice %161 {offsets = [0, 256], sizes = [8, 128], strides = [1, 1]} : vector<8x384xf32> to vector<8x128xf32>
    %180 = arith.addf %179, %11 : vector<8x128xf32>
    %181 = arith.mulf %169, %180 : vector<8x128xf32>
    %182 = arith.addf %178, %181 : vector<8x128xf32>
    %183 = math.tanh %182 : vector<8x128xf32>
    %184 = arith.subf %157, %183 : vector<8x128xf32>
    %185 = arith.mulf %177, %184 : vector<8x128xf32>
    %186 = arith.addf %183, %185 : vector<8x128xf32>
    %c6 = arith.constant 6 : index
    %c0_55 = arith.constant 0 : index
    %c0_56 = arith.constant 0 : index
    %187 = vector.load %arg16[%c6, %c0_55, %c0_56] : memref<8x8x384xf32, #tpu.memory_space<vmem>>, vector<1x8x384xf32>
    %188 = vector.shape_cast %187 : vector<1x8x384xf32> to vector<8x384xf32>
    %c0_57 = arith.constant 0 : index
    %c0_58 = arith.constant 0 : index
    %189 = vector.load %arg3[%c0_57, %c0_58] : memref<128x384xf32, #tpu.memory_space<vmem>>, vector<128x384xf32>
    %cst_59 = arith.constant dense<0.000000e+00> : vector<8x384xf32>
    %190 = tpu.matmul %186, %189, %cst_59 {dimension_numbers = #tpu.dot_dimension_numbers<[1], [0], [0], [1], [0, 0, 1, 1], [], []>} : vector<8x128xf32>, vector<128x384xf32>, vector<8x384xf32> -> vector<8x384xf32>
    %191 = vector.extract_strided_slice %188 {offsets = [0, 0], sizes = [8, 128], strides = [1, 1]} : vector<8x384xf32> to vector<8x128xf32>
    %192 = vector.extract_strided_slice %190 {offsets = [0, 0], sizes = [8, 128], strides = [1, 1]} : vector<8x384xf32> to vector<8x128xf32>
    %193 = arith.addf %191, %192 : vector<8x128xf32>
    %194 = arith.negf %193 : vector<8x128xf32>
    %195 = math.exp %194 : vector<8x128xf32>
    %cst_60 = arith.constant 1.000000e+00 : f32
    %196 = vector.broadcast %cst_60 : f32 to vector<8x128xf32>
    %197 = arith.addf %196, %195 : vector<8x128xf32>
    %198 = arith.divf %196, %197 : vector<8x128xf32>
    %199 = vector.extract_strided_slice %188 {offsets = [0, 128], sizes = [8, 128], strides = [1, 1]} : vector<8x384xf32> to vector<8x128xf32>
    %200 = vector.extract_strided_slice %190 {offsets = [0, 128], sizes = [8, 128], strides = [1, 1]} : vector<8x384xf32> to vector<8x128xf32>
    %201 = arith.addf %199, %200 : vector<8x128xf32>
    %202 = arith.negf %201 : vector<8x128xf32>
    %203 = math.exp %202 : vector<8x128xf32>
    %cst_61 = arith.constant 1.000000e+00 : f32
    %204 = vector.broadcast %cst_61 : f32 to vector<8x128xf32>
    %205 = arith.addf %204, %203 : vector<8x128xf32>
    %206 = arith.divf %204, %205 : vector<8x128xf32>
    %207 = vector.extract_strided_slice %188 {offsets = [0, 256], sizes = [8, 128], strides = [1, 1]} : vector<8x384xf32> to vector<8x128xf32>
    %208 = vector.extract_strided_slice %190 {offsets = [0, 256], sizes = [8, 128], strides = [1, 1]} : vector<8x384xf32> to vector<8x128xf32>
    %209 = arith.addf %208, %11 : vector<8x128xf32>
    %210 = arith.mulf %198, %209 : vector<8x128xf32>
    %211 = arith.addf %207, %210 : vector<8x128xf32>
    %212 = math.tanh %211 : vector<8x128xf32>
    %213 = arith.subf %186, %212 : vector<8x128xf32>
    %214 = arith.mulf %206, %213 : vector<8x128xf32>
    %215 = arith.addf %212, %214 : vector<8x128xf32>
    %c7 = arith.constant 7 : index
    %c0_62 = arith.constant 0 : index
    %c0_63 = arith.constant 0 : index
    %216 = vector.load %arg16[%c7, %c0_62, %c0_63] : memref<8x8x384xf32, #tpu.memory_space<vmem>>, vector<1x8x384xf32>
    %217 = vector.shape_cast %216 : vector<1x8x384xf32> to vector<8x384xf32>
    %c0_64 = arith.constant 0 : index
    %c0_65 = arith.constant 0 : index
    %218 = vector.load %arg3[%c0_64, %c0_65] : memref<128x384xf32, #tpu.memory_space<vmem>>, vector<128x384xf32>
    %cst_66 = arith.constant dense<0.000000e+00> : vector<8x384xf32>
    %219 = tpu.matmul %215, %218, %cst_66 {dimension_numbers = #tpu.dot_dimension_numbers<[1], [0], [0], [1], [0, 0, 1, 1], [], []>} : vector<8x128xf32>, vector<128x384xf32>, vector<8x384xf32> -> vector<8x384xf32>
    %220 = vector.extract_strided_slice %217 {offsets = [0, 0], sizes = [8, 128], strides = [1, 1]} : vector<8x384xf32> to vector<8x128xf32>
    %221 = vector.extract_strided_slice %219 {offsets = [0, 0], sizes = [8, 128], strides = [1, 1]} : vector<8x384xf32> to vector<8x128xf32>
    %222 = arith.addf %220, %221 : vector<8x128xf32>
    %223 = arith.negf %222 : vector<8x128xf32>
    %224 = math.exp %223 : vector<8x128xf32>
    %cst_67 = arith.constant 1.000000e+00 : f32
    %225 = vector.broadcast %cst_67 : f32 to vector<8x128xf32>
    %226 = arith.addf %225, %224 : vector<8x128xf32>
    %227 = arith.divf %225, %226 : vector<8x128xf32>
    %228 = vector.extract_strided_slice %217 {offsets = [0, 128], sizes = [8, 128], strides = [1, 1]} : vector<8x384xf32> to vector<8x128xf32>
    %229 = vector.extract_strided_slice %219 {offsets = [0, 128], sizes = [8, 128], strides = [1, 1]} : vector<8x384xf32> to vector<8x128xf32>
    %230 = arith.addf %228, %229 : vector<8x128xf32>
    %231 = arith.negf %230 : vector<8x128xf32>
    %232 = math.exp %231 : vector<8x128xf32>
    %cst_68 = arith.constant 1.000000e+00 : f32
    %233 = vector.broadcast %cst_68 : f32 to vector<8x128xf32>
    %234 = arith.addf %233, %232 : vector<8x128xf32>
    %235 = arith.divf %233, %234 : vector<8x128xf32>
    %236 = vector.extract_strided_slice %217 {offsets = [0, 256], sizes = [8, 128], strides = [1, 1]} : vector<8x384xf32> to vector<8x128xf32>
    %237 = vector.extract_strided_slice %219 {offsets = [0, 256], sizes = [8, 128], strides = [1, 1]} : vector<8x384xf32> to vector<8x128xf32>
    %238 = arith.addf %237, %11 : vector<8x128xf32>
    %239 = arith.mulf %227, %238 : vector<8x128xf32>
    %240 = arith.addf %236, %239 : vector<8x128xf32>
    %241 = math.tanh %240 : vector<8x128xf32>
    %242 = arith.subf %215, %241 : vector<8x128xf32>
    %243 = arith.mulf %235, %242 : vector<8x128xf32>
    %244 = arith.addf %241, %243 : vector<8x128xf32>
    %c0_69 = arith.constant 0 : index
    %c0_70 = arith.constant 0 : index
    %245 = vector.load %arg5[%c0_69, %c0_70] : memref<128x128xf32, #tpu.memory_space<vmem>>, vector<128x128xf32>
    %cst_71 = arith.constant dense<0.000000e+00> : vector<8x128xf32>
    %246 = tpu.matmul %244, %245, %cst_71 {dimension_numbers = #tpu.dot_dimension_numbers<[1], [0], [0], [1], [0, 0, 1, 1], [], []>} : vector<8x128xf32>, vector<128x128xf32>, vector<8x128xf32> -> vector<8x128xf32>
    %c0_72 = arith.constant 0 : index
    %c0_73 = arith.constant 0 : index
    %247 = vector.load %arg6[%c0_72, %c0_73] : memref<1x128xf32, #tpu.memory_space<vmem>>, vector<1x128xf32>
    %248 = vector.broadcast %247 : vector<1x128xf32> to vector<8x128xf32>
    %249 = arith.addf %246, %248 : vector<8x128xf32>
    %cst_74 = arith.constant 0.000000e+00 : f32
    %250 = vector.broadcast %cst_74 : f32 to vector<8x128xf32>
    %251 = arith.maximumf %249, %250 : vector<8x128xf32>
    %c0_75 = arith.constant 0 : index
    %c0_76 = arith.constant 0 : index
    %252 = vector.load %arg7[%c0_75, %c0_76] : memref<128x64xf32, #tpu.memory_space<vmem>>, vector<128x64xf32>
    %cst_77 = arith.constant dense<0.000000e+00> : vector<8x64xf32>
    %253 = tpu.matmul %251, %252, %cst_77 {dimension_numbers = #tpu.dot_dimension_numbers<[1], [0], [0], [1], [0, 0, 1, 1], [], []>} : vector<8x128xf32>, vector<128x64xf32>, vector<8x64xf32> -> vector<8x64xf32>
    %c0_78 = arith.constant 0 : index
    %c0_79 = arith.constant 0 : index
    %254 = vector.load %arg8[%c0_78, %c0_79] : memref<1x64xf32, #tpu.memory_space<vmem>>, vector<1x64xf32>
    %255 = vector.broadcast %254 : vector<1x64xf32> to vector<8x64xf32>
    %256 = arith.addf %253, %255 : vector<8x64xf32>
    %cst_80 = arith.constant 0.000000e+00 : f32
    %257 = vector.broadcast %cst_80 : f32 to vector<8x64xf32>
    %258 = arith.maximumf %256, %257 : vector<8x64xf32>
    %c0_81 = arith.constant 0 : index
    %c0_82 = arith.constant 0 : index
    %259 = vector.load %arg9[%c0_81, %c0_82] : memref<64x32xf32, #tpu.memory_space<vmem>>, vector<64x32xf32>
    %cst_83 = arith.constant dense<0.000000e+00> : vector<8x32xf32>
    %260 = tpu.matmul %258, %259, %cst_83 {dimension_numbers = #tpu.dot_dimension_numbers<[1], [0], [0], [1], [0, 0, 1, 1], [], []>} : vector<8x64xf32>, vector<64x32xf32>, vector<8x32xf32> -> vector<8x32xf32>
    %c0_84 = arith.constant 0 : index
    %c0_85 = arith.constant 0 : index
    %261 = vector.load %arg10[%c0_84, %c0_85] : memref<1x32xf32, #tpu.memory_space<vmem>>, vector<1x32xf32>
    %262 = vector.broadcast %261 : vector<1x32xf32> to vector<8x32xf32>
    %263 = arith.addf %260, %262 : vector<8x32xf32>
    %cst_86 = arith.constant 0.000000e+00 : f32
    %264 = vector.broadcast %cst_86 : f32 to vector<8x32xf32>
    %265 = arith.maximumf %263, %264 : vector<8x32xf32>
    %c0_87 = arith.constant 0 : index
    %c0_88 = arith.constant 0 : index
    %266 = vector.load %arg11[%c0_87, %c0_88] : memref<32x16xf32, #tpu.memory_space<vmem>>, vector<32x16xf32>
    %cst_89 = arith.constant dense<0.000000e+00> : vector<8x16xf32>
    %267 = tpu.matmul %265, %266, %cst_89 {dimension_numbers = #tpu.dot_dimension_numbers<[1], [0], [0], [1], [0, 0, 1, 1], [], []>} : vector<8x32xf32>, vector<32x16xf32>, vector<8x16xf32> -> vector<8x16xf32>
    %c0_90 = arith.constant 0 : index
    %c0_91 = arith.constant 0 : index
    %268 = vector.load %arg12[%c0_90, %c0_91] : memref<1x16xf32, #tpu.memory_space<vmem>>, vector<1x16xf32>
    %269 = vector.broadcast %268 : vector<1x16xf32> to vector<8x16xf32>
    %270 = arith.addf %267, %269 : vector<8x16xf32>
    %cst_92 = arith.constant 0.000000e+00 : f32
    %271 = vector.broadcast %cst_92 : f32 to vector<8x16xf32>
    %272 = arith.maximumf %270, %271 : vector<8x16xf32>
    %c0_93 = arith.constant 0 : index
    %c0_94 = arith.constant 0 : index
    %273 = vector.load %arg13[%c0_93, %c0_94] : memref<16x128xf32, #tpu.memory_space<vmem>>, vector<16x128xf32>
    %cst_95 = arith.constant dense<0.000000e+00> : vector<8x128xf32>
    %274 = tpu.matmul %272, %273, %cst_95 {dimension_numbers = #tpu.dot_dimension_numbers<[1], [0], [0], [1], [0, 0, 1, 1], [], []>} : vector<8x16xf32>, vector<16x128xf32>, vector<8x128xf32> -> vector<8x128xf32>
    %c0_96 = arith.constant 0 : index
    %c0_97 = arith.constant 0 : index
    %275 = vector.load %arg14[%c0_96, %c0_97] : memref<1x128xf32, #tpu.memory_space<vmem>>, vector<1x128xf32>
    %276 = vector.broadcast %275 : vector<1x128xf32> to vector<8x128xf32>
    %277 = arith.addf %274, %276 : vector<8x128xf32>
    %c0_98 = arith.constant 0 : index
    %c0_99 = arith.constant 0 : index
    %278 = vector.load %arg15[%c0_98, %c0_99] : memref<8x128xf32, #tpu.memory_space<vmem>>, vector<8x128xf32>
    tpu.vector_store %arg15[%c0_98, %c0_99], %277 {strides = array<i32>} : memref<8x128xf32, #tpu.memory_space<vmem>>, vector<8x128xf32>,
    return
  }
}

</mosaic_0001>

<llo_original>
// kernel: player_classify_forward.1
$region0: #{player_classify_forward.1}
  #allocation0 [shape = 'u32[]', space=smem, size = 0x4, offset = 0x4, fixed_abs, tag = 'smem constant byte address 0x4 - core index']
  #allocation1 [shape = 'u32[144,128]{1,0:T(1,128)}', space=vmem, size = 0x12000, scoped, tag = 'internal scratch']
  #allocation2 [shape = 'f32[8,8,384]{2,1,0:T(8,128)}', space=vmem, size = 0x18000, scoped, tag = 'scratch operand']
  %s0 = inlined_call_operand.vmem [shape: f32[8,8,10], index: 0, kind: input, shape index: {}]
  %s1 = inlined_call_operand.hbm [shape: f32[10,384], index: 1, kind: input, shape index: {}]
  %s2 = inlined_call_operand.hbm [shape: f32[1,384], index: 2, kind: input, shape index: {}]
  %s3 = inlined_call_operand.vmem [shape: f32[128,384], index: 3, kind: input, shape index: {}]
  %s4 = inlined_call_operand.hbm [shape: f32[1,128], index: 4, kind: input, shape index: {}]
  %s5 = inlined_call_operand.vmem [shape: f32[128,128], index: 5, kind: input, shape index: {}]
  %s6 = inlined_call_operand.hbm [shape: f32[1,128], index: 6, kind: input, shape index: {}]
  %s7 = inlined_call_operand.vmem [shape: f32[128,64], index: 7, kind: input, shape index: {}]
  %s8 = inlined_call_operand.hbm [shape: f32[1,64], index: 8, kind: input, shape index: {}]
  %s9 = inlined_call_operand.vmem [shape: f32[64,32], index: 9, kind: input, shape index: {}]
  %s10 = inlined_call_operand.hbm [shape: f32[1,32], index: 10, kind: input, shape index: {}]
  %s11 = inlined_call_operand.vmem [shape: f32[32,16], index: 11, kind: input, shape index: {}]
  %s12 = inlined_call_operand.hbm [shape: f32[1,16], index: 12, kind: input, shape index: {}]
  %s13 = inlined_call_operand.vmem [shape: f32[16,128], index: 13, kind: input, shape index: {}]
  %s14 = inlined_call_operand.hbm [shape: f32[1,128], index: 14, kind: input, shape index: {}]
  %s15 = inlined_call_operand.vmem [shape: f32[8,128], index: 15, kind: output, shape index: {}]
  %s16 = sld [smem:[#allocation0]]
  $region102: #{player_classify_forward.1} parent=0
    _
  %s18 = ssub.s32 1, %s16
  %s19 = scalar_select 0, %s18, %s16
  $region1: #{player_classify_forward.1} parent=0
    #allocation3 [shape = 'u8[24576]{0}', space=vmem, size = 0x6000, scoped, tag = 'input window, operand 1, single buffered']
    #allocation4 [shape = 's32[1]{0}', space=sflag, size = 0x4, scoped, tag = 'scoped memory for player_classify_forward.1']
    #allocation5 [shape = 'u8[1536]{0}', space=vmem, size = 0x800, scoped, tag = 'input window, operand 2, single buffered']
    #allocation6 [shape = 's32[1]{0}', space=sflag, size = 0x4, scoped, tag = 'scoped memory for player_classify_forward.1']
    #allocation7 [shape = 'u8[512]{0}', space=vmem, size = 0x400, scoped, tag = 'input window, operand 4, single buffered']
    #allocation8 [shape = 'u8[512]{0}', space=vmem, size = 0x400, scoped, tag = 'input window, operand 6, single buffered']
    #allocation9 [shape = 's32[1]{0}', space=sflag, size = 0x4, scoped, tag = 'scoped memory for player_classify_forward.1']
    #allocation10 [shape = 'u8[512]{0}', space=vmem, size = 0x400, scoped, tag = 'input window, operand 8, single buffered']
    #allocation11 [shape = 'u8[512]{0}', space=vmem, size = 0x400, scoped, tag = 'input window, operand 10, single buffered']
    #allocation12 [shape = 's32[1]{0}', space=sflag, size = 0x4, scoped, tag = 'scoped memory for player_classify_forward.1']
    #allocation13 [shape = 'u8[512]{0}', space=vmem, size = 0x400, scoped, tag = 'input window, operand 12, single buffered']
    #allocation14 [shape = 'u8[512]{0}', space=vmem, size = 0x400, scoped, tag = 'input window, operand 14, single buffered']
    #allocation15 [shape = 's32[1]{0}', space=sflag, size = 0x4, scoped, tag = 'scoped memory for player_classify_forward.1']
    %20 = vsyncpa [#allocation4], 0
    %21 = vsyncpa [#allocation6], 0
    %22 = vsyncpa [#allocation9], 0
    %23 = vsyncpa [#allocation12], 0
    %24 = vsyncpa [#allocation15], 0
    // Predicated region
    $region2: #{player_classify_forward.1} parent=1 // pred_check
      _
    $region3: #{player_classify_forward.1} parent=1 // pred_check_branch
      %26 = sbr.rel (0) target = $region5
    $region4: #{player_classify_forward.1} parent=1 // pred_region
      _
    $region5: #{player_classify_forward.1} parent=1 // pred_fallthru
      _
    // Predicated region
    $region6: #{player_classify_forward.1} parent=1 // pred_check
      _
    $region7: #{player_classify_forward.1} parent=1 // pred_check_branch
      %28 = sbr.rel (0) target = $region9
    $region8: #{player_classify_forward.1} parent=1 // pred_region
      %s30 = ssub.s32 768, 768
      %31 = vsyncadd [#allocation4], %s30
      %s32 = sshll.u32 [#allocation3], 4
      %s33 = int_to_ptr.vmem [resolvable:$true] %s32
      %38 = dma.hbm_to_vmem [thread:$0]  %s1, 768, %s33, [#allocation4], 384, 384, 24
    $region9: #{player_classify_forward.1} parent=1 // pred_fallthru
      _
    // Predicated region
    $region10: #{player_classify_forward.1} parent=1 // pred_check
      _
    $region11: #{player_classify_forward.1} parent=1 // pred_check_branch
      %40 = sbr.rel (0) target = $region13
    $region12: #{player_classify_forward.1} parent=1 // pred_region
      %s42 = ssub.s32 48, 48
      %43 = vsyncadd [#allocation6], %s42
      %s45 = sshll.u32 [#allocation5], 4
      %s46 = int_to_ptr.vmem [resolvable:$true] %s45
      %48 = dma.hbm_to_vmem [thread:$0]  %s2, 48, %s46, [#allocation6]
    $region13: #{player_classify_forward.1} parent=1 // pred_fallthru
      _
    // Predicated region
    $region14: #{player_classify_forward.1} parent=1 // pred_check
      _
    $region15: #{player_classify_forward.1} parent=1 // pred_check_branch
      %50 = sbr.rel (0) target = $region17
    $region16: #{player_classify_forward.1} parent=1 // pred_region
      _
    $region17: #{player_classify_forward.1} parent=1 // pred_fallthru
      _
    // Predicated region
    $region18: #{player_classify_forward.1} parent=1 // pred_check
      _
    $region19: #{player_classify_forward.1} parent=1 // pred_check_branch
      %52 = sbr.rel (0) target = $region21
    $region20: #{player_classify_forward.1} parent=1 // pred_region
      %s54 = ssub.s32 16, 16
      %55 = vsyncadd [#allocation6], %s54
      %s57 = sshll.u32 [#allocation7], 4
      %s58 = int_to_ptr.vmem [resolvable:$true] %s57
      %60 = dma.hbm_to_vmem [thread:$0]  %s4, 16, %s58, [#allocation6]
    $region21: #{player_classify_forward.1} parent=1 // pred_fallthru
      _
    // Predicated region
    $region22: #{player_classify_forward.1} parent=1 // pred_check
      _
    $region23: #{player_classify_forward.1} parent=1 // pred_check_branch
      %62 = sbr.rel (0) target = $region25
    $region24: #{player_classify_forward.1} parent=1 // pred_region
      _
    $region25: #{player_classify_forward.1} parent=1 // pred_fallthru
      _
    // Predicated region
    $region26: #{player_classify_forward.1} parent=1 // pred_check
      _
    $region27: #{player_classify_forward.1} parent=1 // pred_check_branch
      %64 = sbr.rel (0) target = $region29
    $region28: #{player_classify_forward.1} parent=1 // pred_region
      %s66 = ssub.s32 16, 16
      %67 = vsyncadd [#allocation9], %s66
      %s69 = sshll.u32 [#allocation8], 4
      %s70 = int_to_ptr.vmem [resolvable:$true] %s69
      %72 = dma.hbm_to_vmem [thread:$0]  %s6, 16, %s70, [#allocation9]
    $region29: #{player_classify_forward.1} parent=1 // pred_fallthru
      _
    // Predicated region
    $region30: #{player_classify_forward.1} parent=1 // pred_check
      _
    $region31: #{player_classify_forward.1} parent=1 // pred_check_branch
      %74 = sbr.rel (0) target = $region33
    $region32: #{player_classify_forward.1} parent=1 // pred_region
      _
    $region33: #{player_classify_forward.1} parent=1 // pred_fallthru
      _
    // Predicated region
    $region34: #{player_classify_forward.1} parent=1 // pred_check
      _
    $region35: #{player_classify_forward.1} parent=1 // pred_check_branch
      %76 = sbr.rel (0) target = $region37
    $region36: #{player_classify_forward.1} parent=1 // pred_region
      %s78 = ssub.s32 16, 16
      %79 = vsyncadd [#allocation9], %s78
      %s81 = sshll.u32 [#allocation10], 4
      %s82 = int_to_ptr.vmem [resolvable:$true] %s81
      %84 = dma.hbm_to_vmem [thread:$0]  %s8, 16, %s82, [#allocation9]
    $region37: #{player_classify_forward.1} parent=1 // pred_fallthru
      _
    // Predicated region
    $region38: #{player_classify_forward.1} parent=1 // pred_check
      _
    $region39: #{player_classify_forward.1} parent=1 // pred_check_branch
      %86 = sbr.rel (0) target = $region41
    $region40: #{player_classify_forward.1} parent=1 // pred_region
      _
    $region41: #{player_classify_forward.1} parent=1 // pred_fallthru
      _
    // Predicated region
    $region42: #{player_classify_forward.1} parent=1 // pred_check
      _
    $region43: #{player_classify_forward.1} parent=1 // pred_check_branch
      %88 = sbr.rel (0) target = $region45
    $region44: #{player_classify_forward.1} parent=1 // pred_region
      %s90 = ssub.s32 16, 16
      %91 = vsyncadd [#allocation12], %s90
      %s93 = sshll.u32 [#allocation11], 4
      %s94 = int_to_ptr.vmem [resolvable:$true] %s93
      %96 = dma.hbm_to_vmem [thread:$0]  %s10, 16, %s94, [#allocation12]
    $region45: #{player_classify_forward.1} parent=1 // pred_fallthru
      _
    // Predicated region
    $region46: #{player_classify_forward.1} parent=1 // pred_check
      _
    $region47: #{player_classify_forward.1} parent=1 // pred_check_branch
      %98 = sbr.rel (0) target = $region49
    $region48: #{player_classify_forward.1} parent=1 // pred_region
      _
    $region49: #{player_classify_forward.1} parent=1 // pred_fallthru
      _
    // Predicated region
    $region50: #{player_classify_forward.1} parent=1 // pred_check
      _
    $region51: #{player_classify_forward.1} parent=1 // pred_check_branch
      %100 = sbr.rel (0) target = $region53
    $region52: #{player_classify_forward.1} parent=1 // pred_region
      %s102 = ssub.s32 16, 16
      %103 = vsyncadd [#allocation12], %s102
      %s105 = sshll.u32 [#allocation13], 4
      %s106 = int_to_ptr.vmem [resolvable:$true] %s105
      %108 = dma.hbm_to_vmem [thread:$0]  %s12, 16, %s106, [#allocation12]
    $region53: #{player_classify_forward.1} parent=1 // pred_fallthru
      _
    // Predicated region
    $region54: #{player_classify_forward.1} parent=1 // pred_check
      _
    $region55: #{player_classify_forward.1} parent=1 // pred_check_branch
      %110 = sbr.rel (0) target = $region57
    $region56: #{player_classify_forward.1} parent=1 // pred_region
      _
    $region57: #{player_classify_forward.1} parent=1 // pred_fallthru
      _
    // Predicated region
    $region58: #{player_classify_forward.1} parent=1 // pred_check
      _
    $region59: #{player_classify_forward.1} parent=1 // pred_check_branch
      %112 = sbr.rel (0) target = $region61
    $region60: #{player_classify_forward.1} parent=1 // pred_region
      %s114 = ssub.s32 16, 16
      %115 = vsyncadd [#allocation15], %s114
      %s117 = sshll.u32 [#allocation14], 4
      %s118 = int_to_ptr.vmem [resolvable:$true] %s117
      %120 = dma.hbm_to_vmem [thread:$0]  %s14, 16, %s118, [#allocation15]
    $region61: #{player_classify_forward.1} parent=1 // pred_fallthru
      _
    // Predicated region
    $region62: #{player_classify_forward.1} parent=1 // pred_check
      _
    $region63: #{player_classify_forward.1} parent=1 // pred_check_branch
      %122 = sbr.rel (0) target = $region65
    $region64: #{player_classify_forward.1} parent=1 // pred_region
      %123 = dma.done [#allocation4], 768
    $region65: #{player_classify_forward.1} parent=1 // pred_fallthru
      _
    // Predicated region
    $region66: #{player_classify_forward.1} parent=1 // pred_check
      _
    $region67: #{player_classify_forward.1} parent=1 // pred_check_branch
      %125 = sbr.rel (0) target = $region69
    $region68: #{player_classify_forward.1} parent=1 // pred_region
      %126 = dma.done [#allocation6], 48
    $region69: #{player_classify_forward.1} parent=1 // pred_fallthru
      _
    // Predicated region
    $region70: #{player_classify_forward.1} parent=1 // pred_check
      _
    $region71: #{player_classify_forward.1} parent=1 // pred_check_branch
      %128 = sbr.rel (0) target = $region73
    $region72: #{player_classify_forward.1} parent=1 // pred_region
      %129 = dma.done [#allocation6], 16
    $region73: #{player_classify_forward.1} parent=1 // pred_fallthru
      _
    // Predicated region
    $region74: #{player_classify_forward.1} parent=1 // pred_check
      _
    $region75: #{player_classify_forward.1} parent=1 // pred_check_branch
      %131 = sbr.rel (0) target = $region77
    $region76: #{player_classify_forward.1} parent=1 // pred_region
      %132 = dma.done [#allocation9], 16
    $region77: #{player_classify_forward.1} parent=1 // pred_fallthru
      _
    // Predicated region
    $region78: #{player_classify_forward.1} parent=1 // pred_check
      _
    $region79: #{player_classify_forward.1} parent=1 // pred_check_branch
      %134 = sbr.rel (0) target = $region81
    $region80: #{player_classify_forward.1} parent=1 // pred_region
      %135 = dma.done [#allocation9], 16
    $region81: #{player_classify_forward.1} parent=1 // pred_fallthru
      _
    // Predicated region
    $region82: #{player_classify_forward.1} parent=1 // pred_check
      _
    $region83: #{player_classify_forward.1} parent=1 // pred_check_branch
      %137 = sbr.rel (0) target = $region85
    $region84: #{player_classify_forward.1} parent=1 // pred_region
      %138 = dma.done [#allocation12], 16
    $region85: #{player_classify_forward.1} parent=1 // pred_fallthru
      _
    // Predicated region
    $region86: #{player_classify_forward.1} parent=1 // pred_check
      _
    $region87: #{player_classify_forward.1} parent=1 // pred_check_branch
      %140 = sbr.rel (0) target = $region89
    $region88: #{player_classify_forward.1} parent=1 // pred_region
      %141 = dma.done [#allocation12], 16
    $region89: #{player_classify_forward.1} parent=1 // pred_fallthru
      _
    // Predicated region
    $region90: #{player_classify_forward.1} parent=1 // pred_check
      _
    $region91: #{player_classify_forward.1} parent=1 // pred_check_branch
      %143 = sbr.rel (0) target = $region93
    $region92: #{player_classify_forward.1} parent=1 // pred_region
      %144 = dma.done [#allocation15], 16
    $region93: #{player_classify_forward.1} parent=1 // pred_fallthru
      _
    %v145 = vld [vmem:[%s0] sm:$0xff]
    %v146 = vld [vmem:[%s0 + $0x8] sm:$0xff]
    %v147 = vld [vmem:[%s0 + $0x10] sm:$0xff]
    %v148 = vld [vmem:[%s0 + $0x18] sm:$0xff]
    %v149 = vld [vmem:[%s0 + $0x20] sm:$0xff]
    %v150 = vld [vmem:[%s0 + $0x28] sm:$0xff]
    %v151 = vld [vmem:[%s0 + $0x30] sm:$0xff]
    %v152 = vld [vmem:[%s0 + $0x38] sm:$0xff]
    %v153 = vld [vmem:[#allocation3] sm:$0xff]
    %v154 = vld [vmem:[#allocation3 + $0x8] sm:$0xff]
    %v155 = vld [vmem:[#allocation3 + $0x10] sm:$0xff]
    %v156 = vld [vmem:[#allocation3 + $0x18] sm:$0x3]
    %v157 = vld [vmem:[#allocation3 + $0x20] sm:$0x3]
    %v158 = vld [vmem:[#allocation3 + $0x28] sm:$0x3]
    %v159 = vld [vmem:[#allocation5] sm:$0x7]
    %v161 = vlaneseq
    %v162 = vshrl.u32 %v161, 7
    %v163 = vsub.s32 0, %v162
    %v164 = vrot.slane %v159, %v163
    %v165 = vlaneseq
    %v166 = vshrl.u32 %v165, 7
    %v167 = vsub.s32 1, %v166
    %v168 = vrot.slane %v159, %v167
    %v169 = vlaneseq
    %v170 = vshrl.u32 %v169, 7
    %v171 = vsub.s32 2, %v170
    %v172 = vrot.slane %v159, %v171
    %vm176 = vcmask 80896
    %v178 = vsel %vm176, %v145, 0
    %v181 = vsel %vm176, %v146, 0
    %v184 = vsel %vm176, %v147, 0
    %v187 = vsel %vm176, %v148, 0
    %v190 = vsel %vm176, %v149, 0
    %v193 = vsel %vm176, %v150, 0
    %v196 = vsel %vm176, %v151, 0
    %v199 = vsel %vm176, %v152, 0
    %vm201 = vcmask 1041408
    %v203 = vsel %vm201, %v156, 0
    %v206 = vsel %vm201, %v157, 0
    %v209 = vsel %vm201, %v158, 0
    %211 = vmatprep.subr.mxu0 %v154
    %212 = vmatpush1.msra.mxu0 %v153
    %213 = vmatprep.subr.mxu0 %v206
    %214 = vmatpush1.msra.mxu0 %v203
    %215 = vmatprep.subr.mxu0 0.0
    %216 = vmatpush1.msra.mxu0 0.0
    %217 = vmatprep.subr.mxu0 0.0
    %218 = vmatpush1.msra.mxu0 0.0
    %219 = vmatprep.subr.mxu0 0.0
    %220 = vmatpush1.msra.mxu0 0.0
    %221 = vmatprep.subr.mxu0 0.0
    %222 = vmatpush1.msra.mxu0 0.0
    %223 = vmatprep.subr.mxu0 0.0
    %224 = vmatpush1.msra.mxu0 0.0
    %225 = vmatprep.subr.mxu0 0.0
    %226 = vmatpush1.msra.mxu0 0.0
    %227 = vmatprep.subr.mxu0 0.0
    %228 = vmatpush1.msra.mxu0 0.0
    %229 = vmatprep.subr.mxu0 0.0
    %230 = vmatpush1.msra.mxu0 0.0
    %231 = vmatprep.subr.mxu0 0.0
    %232 = vmatpush1.msra.mxu0 0.0
    %233 = vmatprep.subr.mxu0 0.0
    %234 = vmatpush1.msra.mxu0 0.0
    %235 = vmatprep.subr.mxu0 0.0
    %236 = vmatpush1.msra.mxu0 0.0
    %237 = vmatprep.subr.mxu0 0.0
    %238 = vmatpush1.msra.mxu0 0.0
    %239 = vmatprep.subr.mxu0 0.0
    %240 = vmatpush1.msra.mxu0 0.0
    %241 = vmatprep.subr.mxu0 0.0
    %242 = vmatpush1.msra.mxu0 0.0
    %243 = vmatprep.subr.mxu0 0.0
    %244 = vmatpush1.msra.mxu0 0.0
    %245 = vmatprep.subr.mxu0 0.0
    %246 = vmatpush1.msra.mxu0 0.0
    %247 = vmatprep.subr.mxu0 0.0
    %248 = vmatpush1.msra.mxu0 0.0
    %249 = vmatprep.subr.mxu0 0.0
    %250 = vmatpush1.msra.mxu0 0.0
    %251 = vmatprep.subr.mxu0 0.0
    %252 = vmatpush1.msra.mxu0 0.0
    %253 = vmatprep.subr.mxu0 0.0
    %254 = vmatpush1.msra.mxu0 0.0
    %255 = vmatprep.subr.mxu0 0.0
    %256 = vmatpush1.msra.mxu0 0.0
    %257 = vmatprep.subr.mxu0 0.0
    %258 = vmatpush1.msra.mxu0 0.0
    %259 = vmatprep.subr.mxu0 0.0
    %260 = vmatpush1.msra.mxu0 0.0
    %261 = vmatprep.subr.mxu0 0.0
    %262 = vmatpush1.msra.mxu0 0.0
    %263 = vmatprep.subr.mxu0 0.0
    %264 = vmatpush1.msra.mxu0 0.0
    %265 = vmatprep.subr.mxu0 0.0
    %266 = vmatpush1.msra.mxu0 0.0
    %267 = vmatprep.subr.mxu0 0.0
    %268 = vmatpush1.msra.mxu0 0.0
    %269 = vmatprep.subr.mxu0 0.0
    %270 = vmatpush1.msra.mxu0 0.0
    %271 = vmatprep.subr.mxu0 0.0
    %272 = vmatpush1.msra.mxu0 0.0
    %273 = vmatprep.subr.mxu0 0.0
    %274 = vmatpush1.msra.mxu0 0.0
    %275 = vmatprep.mubr.f32.mxu0 0.0
    %276 = vmatmul.mubr.f32.gmra.mrb[0].mxu0 %v178
    %v277 = vpop.f32.mrb[0].mxu0
    %v278 = vadd.f32 %v164, %v277
    %v279 = vpop.f32.mrb[0].mxu0
    %v280 = vadd.f32 %v168, %v279
    %281 = vmatprep.mubr.f32.mxu0 0.0
    %282 = vmatmul.mubr.f32.gmra.mrb[0].mxu0 %v181
    %v283 = vpop.f32.mrb[0].mxu0
    %v284 = vadd.f32 %v164, %v283
    %v285 = vpop.f32.mrb[0].mxu0
    %v286 = vadd.f32 %v168, %v285
    %287 = vmatprep.mubr.f32.mxu0 0.0
    %288 = vmatmul.mubr.f32.gmra.mrb[0].mxu0 %v184
    %v289 = vpop.f32.mrb[0].mxu0
    %v290 = vadd.f32 %v164, %v289
    %v291 = vpop.f32.mrb[0].mxu0
    %v292 = vadd.f32 %v168, %v291
    %293 = vmatprep.mubr.f32.mxu0 0.0
    %294 = vmatmul.mubr.f32.gmra.mrb[0].mxu0 %v187
    %v295 = vpop.f32.mrb[0].mxu0
    %v296 = vadd.f32 %v164, %v295
    %v297 = vpop.f32.mrb[0].mxu0
    %v298 = vadd.f32 %v168, %v297
    %299 = vmatprep.mubr.f32.mxu0 0.0
    %300 = vmatmul.mubr.f32.gmra.mrb[0].mxu0 %v190
    %v301 = vpop.f32.mrb[0].mxu0
    %v302 = vadd.f32 %v164, %v301
    %v303 = vpop.f32.mrb[0].mxu0
    %v304 = vadd.f32 %v168, %v303
    %305 = vmatprep.mubr.f32.mxu0 0.0
    %306 = vmatmul.mubr.f32.gmra.mrb[0].mxu0 %v193
    %v307 = vpop.f32.mrb[0].mxu0
    %v308 = vadd.f32 %v164, %v307
    %v309 = vpop.f32.mrb[0].mxu0
    %v310 = vadd.f32 %v168, %v309
    %311 = vmatprep.mubr.f32.mxu0 0.0
    %312 = vmatmul.mubr.f32.gmra.mrb[0].mxu0 %v196
    %v313 = vpop.f32.mrb[0].mxu0
    %v314 = vadd.f32 %v164, %v313
    %v315 = vpop.f32.mrb[0].mxu0
    %v316 = vadd.f32 %v168, %v315
    %317 = vmatprep.mubr.f32.mxu0 0.0
    %318 = vmatmul.mubr.f32.gmra.mrb[0].mxu0 %v199
    %v319 = vpop.f32.mrb[0].mxu0
    %v320 = vadd.f32 %v164, %v319
    %v321 = vpop.f32.mrb[0].mxu0
    %v322 = vadd.f32 %v168, %v321
    %323 = vdwg.mxu0
    %324 = vmatprep.subr.mxu0 0.0
    %325 = vmatpush1.msra.mxu0 %v155
    %326 = vmatprep.subr.mxu0 0.0
    %327 = vmatpush1.msra.mxu0 %v209
    %328 = vmatprep.subr.mxu0 0.0
    %329 = vmatpush1.msra.mxu0 0.0
    %330 = vmatprep.subr.mxu0 0.0
    %331 = vmatpush1.msra.mxu0 0.0
    %332 = vmatprep.subr.mxu0 0.0
    %333 = vmatpush1.msra.mxu0 0.0
    %334 = vmatprep.subr.mxu0 0.0
    %335 = vmatpush1.msra.mxu0 0.0
    %336 = vmatprep.subr.mxu0 0.0
    %337 = vmatpush1.msra.mxu0 0.0
    %338 = vmatprep.subr.mxu0 0.0
    %339 = vmatpush1.msra.mxu0 0.0
    %340 = vmatprep.subr.mxu0 0.0
    %341 = vmatpush1.msra.mxu0 0.0
    %342 = vmatprep.subr.mxu0 0.0
    %343 = vmatpush1.msra.mxu0 0.0
    %344 = vmatprep.subr.mxu0 0.0
    %345 = vmatpush1.msra.mxu0 0.0
    %346 = vmatprep.subr.mxu0 0.0
    %347 = vmatpush1.msra.mxu0 0.0
    %348 = vmatprep.subr.mxu0 0.0
    %349 = vmatpush1.msra.mxu0 0.0
    %350 = vmatprep.subr.mxu0 0.0
    %351 = vmatpush1.msra.mxu0 0.0
    %352 = vmatprep.subr.mxu0 0.0
    %353 = vmatpush1.msra.mxu0 0.0
    %354 = vmatprep.subr.mxu0 0.0
    %355 = vmatpush1.msra.mxu0 0.0
    %356 = vmatprep.subr.mxu0 0.0
    %357 = vmatpush1.msra.mxu0 0.0
    %358 = vmatprep.subr.mxu0 0.0
    %359 = vmatpush1.msra.mxu0 0.0
    %360 = vmatprep.subr.mxu0 0.0
    %361 = vmatpush1.msra.mxu0 0.0
    %362 = vmatprep.subr.mxu0 0.0
    %363 = vmatpush1.msra.mxu0 0.0
    %364 = vmatprep.subr.mxu0 0.0
    %365 = vmatpush1.msra.mxu0 0.0
    %366 = vmatprep.subr.mxu0 0.0
    %367 = vmatpush1.msra.mxu0 0.0
    %368 = vmatprep.subr.mxu0 0.0
    %369 = vmatpush1.msra.mxu0 0.0
    %370 = vmatprep.subr.mxu0 0.0
    %371 = vmatpush1.msra.mxu0 0.0
    %372 = vmatprep.subr.mxu0 0.0
    %373 = vmatpush1.msra.mxu0 0.0
    %374 = vmatprep.subr.mxu0 0.0
    %375 = vmatpush1.msra.mxu0 0.0
    %376 = vmatprep.subr.mxu0 0.0
    %377 = vmatpush1.msra.mxu0 0.0
    %378 = vmatprep.subr.mxu0 0.0
    %379 = vmatpush1.msra.mxu0 0.0
    %380 = vmatprep.subr.mxu0 0.0
    %381 = vmatpush1.msra.mxu0 0.0
    %382 = vmatprep.subr.mxu0 0.0
    %383 = vmatpush1.msra.mxu0 0.0
    %384 = vmatprep.subr.mxu0 0.0
    %385 = vmatpush1.msra.mxu0 0.0
    %386 = vmatprep.subr.mxu0 0.0
    %387 = vmatpush1.msra.mxu0 0.0
    %388 = vmatprep.mubr.f32.mxu0 0.0
    %389 = vmatmul.mubr.f32.gmra.mrb[0].mxu0 %v178
    %v390 = vpop.f32.mrb[0].mxu0
    %v391 = vadd.f32 %v172, %v390
    %v392 = vpop.f32.mrb[0].mxu0
    %393 = vmatprep.mubr.f32.mxu0 0.0
    %394 = vmatmul.mubr.f32.gmra.mrb[0].mxu0 %v181
    %v395 = vpop.f32.mrb[0].mxu0
    %v396 = vadd.f32 %v172, %v395
    %v397 = vpop.f32.mrb[0].mxu0
    %398 = vmatprep.mubr.f32.mxu0 0.0
    %399 = vmatmul.mubr.f32.gmra.mrb[0].mxu0 %v184
    %v400 = vpop.f32.mrb[0].mxu0
    %v401 = vadd.f32 %v172, %v400
    %v402 = vpop.f32.mrb[0].mxu0
    %403 = vmatprep.mubr.f32.mxu0 0.0
    %404 = vmatmul.mubr.f32.gmra.mrb[0].mxu0 %v187
    %v405 = vpop.f32.mrb[0].mxu0
    %v406 = vadd.f32 %v172, %v405
    %v407 = vpop.f32.mrb[0].mxu0
    %408 = vmatprep.mubr.f32.mxu0 0.0
    %409 = vmatmul.mubr.f32.gmra.mrb[0].mxu0 %v190
    %v410 = vpop.f32.mrb[0].mxu0
    %v411 = vadd.f32 %v172, %v410
    %v412 = vpop.f32.mrb[0].mxu0
    %413 = vmatprep.mubr.f32.mxu0 0.0
    %414 = vmatmul.mubr.f32.gmra.mrb[0].mxu0 %v193
    %v415 = vpop.f32.mrb[0].mxu0
    %v416 = vadd.f32 %v172, %v415
    %v417 = vpop.f32.mrb[0].mxu0
    %418 = vmatprep.mubr.f32.mxu0 0.0
    %419 = vmatmul.mubr.f32.gmra.mrb[0].mxu0 %v196
    %v420 = vpop.f32.mrb[0].mxu0
    %v421 = vadd.f32 %v172, %v420
    %v422 = vpop.f32.mrb[0].mxu0
    %423 = vmatprep.mubr.f32.mxu0 0.0
    %424 = vmatmul.mubr.f32.gmra.mrb[0].mxu0 %v199
    %v425 = vpop.f32.mrb[0].mxu0
    %v426 = vadd.f32 %v172, %v425
    %v427 = vpop.f32.mrb[0].mxu0
    %428 = vdwg.mxu0
    %429 = vst [vmem:[#allocation2] sm:$0xff] %v278
    %430 = vst [vmem:[#allocation2 + $0x8] sm:$0xff] %v280
    %431 = vst [vmem:[#allocation2 + $0x10] sm:$0xff] %v391
    %432 = vst [vmem:[#allocation2 + $0x18] sm:$0xff] %v284
    %433 = vst [vmem:[#allocation2 + $0x20] sm:$0xff] %v286
    %434 = vst [vmem:[#allocation2 + $0x28] sm:$0xff] %v396
    %435 = vst [vmem:[#allocation2 + $0x30] sm:$0xff] %v290
    %436 = vst [vmem:[#allocation2 + $0x38] sm:$0xff] %v292
    %437 = vst [vmem:[#allocation2 + $0x40] sm:$0xff] %v401
    %438 = vst [vmem:[#allocation2 + $0x48] sm:$0xff] %v296
    %439 = vst [vmem:[#allocation2 + $0x50] sm:$0xff] %v298
    %440 = vst [vmem:[#allocation2 + $0x58] sm:$0xff] %v406
    %441 = vst [vmem:[#allocation2 + $0x60] sm:$0xff] %v302
    %442 = vst [vmem:[#allocation2 + $0x68] sm:$0xff] %v304
    %443 = vst [vmem:[#allocation2 + $0x70] sm:$0xff] %v411
    %444 = vst [vmem:[#allocation2 + $0x78] sm:$0xff] %v308
    %445 = vst [vmem:[#allocation2 + $0x80] sm:$0xff] %v310
    %446 = vst [vmem:[#allocation2 + $0x88] sm:$0xff] %v416
    %447 = vst [vmem:[#allocation2 + $0x90] sm:$0xff] %v314
    %448 = vst [vmem:[#allocation2 + $0x98] sm:$0xff] %v316
    %449 = vst [vmem:[#allocation2 + $0xa0] sm:$0xff] %v421
    %450 = vst [vmem:[#allocation2 + $0xa8] sm:$0xff] %v320
    %451 = vst [vmem:[#allocation2 + $0xb0] sm:$0xff] %v322
    %452 = vst [vmem:[#allocation2 + $0xb8] sm:$0xff] %v426
    %v453 = vld [vmem:[#allocation7] sm:$0x1]
    %v455 = vlaneseq
    %v456 = vshrl.u32 %v455, 7
    %v457 = vsub.s32 0, %v456
    %v458 = vrot.slane %v453, %v457
    %v460 = vld [vmem:[#allocation2] sm:$0xff]
    %v461 = vld [vmem:[#allocation2 + $0x8] sm:$0xff]
    %v462 = vld [vmem:[#allocation2 + $0x10] sm:$0xff]
    %v463 = vld [vmem:[%s3] sm:$0xff]
    %v464 = vld [vmem:[%s3 + $0x8] sm:$0xff]
    %v465 = vld [vmem:[%s3 + $0x10] sm:$0xff]
    %v466 = vld [vmem:[%s3 + $0x18] sm:$0xff]
    %v467 = vld [vmem:[%s3 + $0x20] sm:$0xff]
    %v468 = vld [vmem:[%s3 + $0x28] sm:$0xff]
    %v469 = vld [vmem:[%s3 + $0x30] sm:$0xff]
    %v470 = vld [vmem:[%s3 + $0x38] sm:$0xff]
    %v471 = vld [vmem:[%s3 + $0x40] sm:$0xff]
    %v472 = vld [vmem:[%s3 + $0x48] sm:$0xff]
    %v473 = vld [vmem:[%s3 + $0x50] sm:$0xff]
    %v474 = vld [vmem:[%s3 + $0x58] sm:$0xff]
    %v475 = vld [vmem:[%s3 + $0x60] sm:$0xff]
    %v476 = vld [vmem:[%s3 + $0x68] sm:$0xff]
    %v477 = vld [vmem:[%s3 + $0x70] sm:$0xff]
    %v478 = vld [vmem:[%s3 + $0x78] sm:$0xff]
    %v479 = vld [vmem:[%s3 + $0x80] sm:$0xff]
    %v480 = vld [vmem:[%s3 + $0x88] sm:$0xff]
    %v481 = vld [vmem:[%s3 + $0x90] sm:$0xff]
    %v482 = vld [vmem:[%s3 + $0x98] sm:$0xff]
    %v483 = vld [vmem:[%s3 + $0xa0] sm:$0xff]
    %v484 = vld [vmem:[%s3 + $0xa8] sm:$0xff]
    %v485 = vld [vmem:[%s3 + $0xb0] sm:$0xff]
    %v486 = vld [vmem:[%s3 + $0xb8] sm:$0xff]
    %v487 = vld [vmem:[%s3 + $0xc0] sm:$0xff]
    %v488 = vld [vmem:[%s3 + $0xc8] sm:$0xff]
    %v489 = vld [vmem:[%s3 + $0xd0] sm:$0xff]
    %v490 = vld [vmem:[%s3 + $0xd8] sm:$0xff]
    %v491 = vld [vmem:[%s3 + $0xe0] sm:$0xff]
    %v492 = vld [vmem:[%s3 + $0xe8] sm:$0xff]
    %v493 = vld [vmem:[%s3 + $0xf0] sm:$0xff]
    %v494 = vld [vmem:[%s3 + $0xf8] sm:$0xff]
    %v495 = vld [vmem:[%s3 + $0x100] sm:$0xff]
    %v496 = vld [vmem:[%s3 + $0x108] sm:$0xff]
    %v497 = vld [vmem:[%s3 + $0x110] sm:$0xff]
    %v498 = vld [vmem:[%s3 + $0x118] sm:$0xff]
    %v499 = vld [vmem:[%s3 + $0x120] sm:$0xff]
    %v500 = vld [vmem:[%s3 + $0x128] sm:$0xff]
    %v501 = vld [vmem:[%s3 + $0x130] sm:$0xff]
    %v502 = vld [vmem:[%s3 + $0x138] sm:$0xff]
    %v503 = vld [vmem:[%s3 + $0x140] sm:$0xff]
    %v504 = vld [vmem:[%s3 + $0x148] sm:$0xff]
    %v505 = vld [vmem:[%s3 + $0x150] sm:$0xff]
    %v506 = vld [vmem:[%s3 + $0x158] sm:$0xff]
    %v507 = vld [vmem:[%s3 + $0x160] sm:$0xff]
    %v508 = vld [vmem:[%s3 + $0x168] sm:$0xff]
    %v509 = vld [vmem:[%s3 + $0x170] sm:$0xff]
    %v510 = vld [vmem:[%s3 + $0x178] sm:$0xff]
    %511 = vmatprep.subr.mxu0 %v464
    %512 = vmatpush1.msra.mxu0 %v463
    %513 = vmatprep.subr.mxu0 %v467
    %514 = vmatpush1.msra.mxu0 %v466
    %515 = vmatprep.subr.mxu0 %v470
    %516 = vmatpush1.msra.mxu0 %v469
    %517 = vmatprep.subr.mxu0 %v473
    %518 = vmatpush1.msra.mxu0 %v472
    %519 = vmatprep.subr.mxu0 %v476
    %520 = vmatpush1.msra.mxu0 %v475
    %521 = vmatprep.subr.mxu0 %v479
    %522 = vmatpush1.msra.mxu0 %v478
    %523 = vmatprep.subr.mxu0 %v482
    %524 = vmatpush1.msra.mxu0 %v481
    %525 = vmatprep.subr.mxu0 %v485
    %526 = vmatpush1.msra.mxu0 %v484
    %527 = vmatprep.subr.mxu0 %v488
    %528 = vmatpush1.msra.mxu0 %v487
    %529 = vmatprep.subr.mxu0 %v491
    %530 = vmatpush1.msra.mxu0 %v490
    %531 = vmatprep.subr.mxu0 %v494
    %532 = vmatpush1.msra.mxu0 %v493
    %533 = vmatprep.subr.mxu0 %v497
    %534 = vmatpush1.msra.mxu0 %v496
    %535 = vmatprep.subr.mxu0 %v500
    %536 = vmatpush1.msra.mxu0 %v499
    %537 = vmatprep.subr.mxu0 %v503
    %538 = vmatpush1.msra.mxu0 %v502
    %539 = vmatprep.subr.mxu0 %v506
    %540 = vmatpush1.msra.mxu0 %v505
    %541 = vmatprep.subr.mxu0 %v509
    %542 = vmatpush1.msra.mxu0 %v508
    %543 = vmatprep.subr.mxu0 0.0
    %544 = vmatpush1.msra.mxu0 0.0
    %545 = vmatprep.subr.mxu0 0.0
    %546 = vmatpush1.msra.mxu0 0.0
    %547 = vmatprep.subr.mxu0 0.0
    %548 = vmatpush1.msra.mxu0 0.0
    %549 = vmatprep.subr.mxu0 0.0
    %550 = vmatpush1.msra.mxu0 0.0
    %551 = vmatprep.subr.mxu0 0.0
    %552 = vmatpush1.msra.mxu0 0.0
    %553 = vmatprep.subr.mxu0 0.0
    %554 = vmatpush1.msra.mxu0 0.0
    %555 = vmatprep.subr.mxu0 0.0
    %556 = vmatpush1.msra.mxu0 0.0
    %557 = vmatprep.subr.mxu0 0.0
    %558 = vmatpush1.msra.mxu0 0.0
    %559 = vmatprep.subr.mxu0 0.0
    %560 = vmatpush1.msra.mxu0 0.0
    %561 = vmatprep.subr.mxu0 0.0
    %562 = vmatpush1.msra.mxu0 0.0
    %563 = vmatprep.subr.mxu0 0.0
    %564 = vmatpush1.msra.mxu0 0.0
    %565 = vmatprep.subr.mxu0 0.0
    %566 = vmatpush1.msra.mxu0 0.0
    %567 = vmatprep.subr.mxu0 0.0
    %568 = vmatpush1.msra.mxu0 0.0
    %569 = vmatprep.subr.mxu0 0.0
    %570 = vmatpush1.msra.mxu0 0.0
    %571 = vmatprep.subr.mxu0 0.0
    %572 = vmatpush1.msra.mxu0 0.0
    %573 = vmatprep.subr.mxu0 0.0
    %574 = vmatpush1.msra.mxu0 0.0
    %575 = vmatprep.mubr.f32.mxu0 0.0
    %576 = vmatmul.mubr.f32.gmra.mrb[0].mxu0 0.0
    %v577 = vpop.f32.mrb[0].mxu0
    %v578 = vadd.f32 0.0, %v577
    %v579 = vpop.f32.mrb[0].mxu0
    %v580 = vadd.f32 0.0, %v579
    %581 = vdwg.mxu0
    %582 = vmatprep.subr.mxu0 0.0
    %583 = vmatpush1.msra.mxu0 %v465
    %584 = vmatprep.subr.mxu0 0.0
    %585 = vmatpush1.msra.mxu0 %v468
    %586 = vmatprep.subr.mxu0 0.0
    %587 = vmatpush1.msra.mxu0 %v471
    %588 = vmatprep.subr.mxu0 0.0
    %589 = vmatpush1.msra.mxu0 %v474
    %590 = vmatprep.subr.mxu0 0.0
    %591 = vmatpush1.msra.mxu0 %v477
    %592 = vmatprep.subr.mxu0 0.0
    %593 = vmatpush1.msra.mxu0 %v480
    %594 = vmatprep.subr.mxu0 0.0
    %595 = vmatpush1.msra.mxu0 %v483
    %596 = vmatprep.subr.mxu0 0.0
    %597 = vmatpush1.msra.mxu0 %v486
    %598 = vmatprep.subr.mxu0 0.0
    %599 = vmatpush1.msra.mxu0 %v489
    %600 = vmatprep.subr.mxu0 0.0
    %601 = vmatpush1.msra.mxu0 %v492
    %602 = vmatprep.subr.mxu0 0.0
    %603 = vmatpush1.msra.mxu0 %v495
    %604 = vmatprep.subr.mxu0 0.0
    %605 = vmatpush1.msra.mxu0 %v498
    %606 = vmatprep.subr.mxu0 0.0
    %607 = vmatpush1.msra.mxu0 %v501
    %608 = vmatprep.subr.mxu0 0.0
    %609 = vmatpush1.msra.mxu0 %v504
    %610 = vmatprep.subr.mxu0 0.0
    %611 = vmatpush1.msra.mxu0 %v507
    %612 = vmatprep.subr.mxu0 0.0
    %613 = vmatpush1.msra.mxu0 %v510
    %614 = vmatprep.subr.mxu0 0.0
    %615 = vmatpush1.msra.mxu0 0.0
    %616 = vmatprep.subr.mxu0 0.0
    %617 = vmatpush1.msra.mxu0 0.0
    %618 = vmatprep.subr.mxu0 0.0
    %619 = vmatpush1.msra.mxu0 0.0
    %620 = vmatprep.subr.mxu0 0.0
    %621 = vmatpush1.msra.mxu0 0.0
    %622 = vmatprep.subr.mxu0 0.0
    %623 = vmatpush1.msra.mxu0 0.0
    %624 = vmatprep.subr.mxu0 0.0
    %625 = vmatpush1.msra.mxu0 0.0
    %626 = vmatprep.subr.mxu0 0.0
    %627 = vmatpush1.msra.mxu0 0.0
    %628 = vmatprep.subr.mxu0 0.0
    %629 = vmatpush1.msra.mxu0 0.0
    %630 = vmatprep.subr.mxu0 0.0
    %631 = vmatpush1.msra.mxu0 0.0
    %632 = vmatprep.subr.mxu0 0.0
    %633 = vmatpush1.msra.mxu0 0.0
    %634 = vmatprep.subr.mxu0 0.0
    %635 = vmatpush1.msra.mxu0 0.0
    %636 = vmatprep.subr.mxu0 0.0
    %637 = vmatpush1.msra.mxu0 0.0
    %638 = vmatprep.subr.mxu0 0.0
    %639 = vmatpush1.msra.mxu0 0.0
    %640 = vmatprep.subr.mxu0 0.0
    %641 = vmatpush1.msra.mxu0 0.0
    %642 = vmatprep.subr.mxu0 0.0
    %643 = vmatpush1.msra.mxu0 0.0
    %644 = vmatprep.subr.mxu0 0.0
    %645 = vmatpush1.msra.mxu0 0.0
    %646 = vmatprep.mubr.f32.mxu0 0.0
    %647 = vmatmul.mubr.f32.gmra.mrb[0].mxu0 0.0
    %v648 = vpop.f32.mrb[0].mxu0
    %v649 = vadd.f32 0.0, %v648
    %v650 = vpop.f32.mrb[0].mxu0
    %651 = vdwg.mxu0
    %v652 = vadd.f32 %v460, %v578
    %v653 = vxor.u32 %v652, 2147483648
    %v654 = vmul.f32 %v653, 1.442695
    %v655 = vpow.pop %v654
    %v656 = vadd.f32 %v655, 1.0
    %v657 = vrcp.pop %v656
    %v658 = vmul.f32 1.0, %v657
    %v659 = vadd.f32 %v461, %v580
    %v660 = vxor.u32 %v659, 2147483648
    %v661 = vmul.f32 %v660, 1.442695
    %v662 = vpow.pop %v661
    %v663 = vadd.f32 %v662, 1.0
    %v664 = vrcp.pop %v663
    %v665 = vmul.f32 1.0, %v664
    %v666 = vadd.f32 %v649, %v458
    %v667 = vmul.f32 %v658, %v666
    %v668 = vadd.f32 %v462, %v667
    %v669 = vtanh.pop %v668
    %v670 = vsub.f32 0.0, %v669
    %v671 = vmul.f32 %v665, %v670
    %v672 = vadd.f32 %v669, %v671
    %s673 = scalar_lea.vmem [#allocation2], 24
    %v674 = vld [vmem:[%s673] sm:$0xff]
    %v675 = vld [vmem:[%s673 + $0x8] sm:$0xff]
    %v676 = vld [vmem:[%s673 + $0x10] sm:$0xff]
    %677 = vmatprep.subr.mxu0 %v464
    %678 = vmatpush1.msra.mxu0 %v463
    %679 = vmatprep.subr.mxu0 %v467
    %680 = vmatpush1.msra.mxu0 %v466
    %681 = vmatprep.subr.mxu0 %v470
    %682 = vmatpush1.msra.mxu0 %v469
    %683 = vmatprep.subr.mxu0 %v473
    %684 = vmatpush1.msra.mxu0 %v472
    %685 = vmatprep.subr.mxu0 %v476
    %686 = vmatpush1.msra.mxu0 %v475
    %687 = vmatprep.subr.mxu0 %v479
    %688 = vmatpush1.msra.mxu0 %v478
    %689 = vmatprep.subr.mxu0 %v482
    %690 = vmatpush1.msra.mxu0 %v481
    %691 = vmatprep.subr.mxu0 %v485
    %692 = vmatpush1.msra.mxu0 %v484
    %693 = vmatprep.subr.mxu0 %v488
    %694 = vmatpush1.msra.mxu0 %v487
    %695 = vmatprep.subr.mxu0 %v491
    %696 = vmatpush1.msra.mxu0 %v490
    %697 = vmatprep.subr.mxu0 %v494
    %698 = vmatpush1.msra.mxu0 %v493
    %699 = vmatprep.subr.mxu0 %v497
    %700 = vmatpush1.msra.mxu0 %v496
    %701 = vmatprep.subr.mxu0 %v500
    %702 = vmatpush1.msra.mxu0 %v499
    %703 = vmatprep.subr.mxu0 %v503
    %704 = vmatpush1.msra.mxu0 %v502
    %705 = vmatprep.subr.mxu0 %v506
    %706 = vmatpush1.msra.mxu0 %v505
    %707 = vmatprep.subr.mxu0 %v509
    %708 = vmatpush1.msra.mxu0 %v508
    %709 = vmatprep.subr.mxu0 0.0
    %710 = vmatpush1.msra.mxu0 0.0
    %711 = vmatprep.subr.mxu0 0.0
    %712 = vmatpush1.msra.mxu0 0.0
    %713 = vmatprep.subr.mxu0 0.0
    %714 = vmatpush1.msra.mxu0 0.0
    %715 = vmatprep.subr.mxu0 0.0
    %716 = vmatpush1.msra.mxu0 0.0
    %717 = vmatprep.subr.mxu0 0.0
    %718 = vmatpush1.msra.mxu0 0.0
    %719 = vmatprep.subr.mxu0 0.0
    %720 = vmatpush1.msra.mxu0 0.0
    %721 = vmatprep.subr.mxu0 0.0
    %722 = vmatpush1.msra.mxu0 0.0
    %723 = vmatprep.subr.mxu0 0.0
    %724 = vmatpush1.msra.mxu0 0.0
    %725 = vmatprep.subr.mxu0 0.0
    %726 = vmatpush1.msra.mxu0 0.0
    %727 = vmatprep.subr.mxu0 0.0
    %728 = vmatpush1.msra.mxu0 0.0
    %729 = vmatprep.subr.mxu0 0.0
    %730 = vmatpush1.msra.mxu0 0.0
    %731 = vmatprep.subr.mxu0 0.0
    %732 = vmatpush1.msra.mxu0 0.0
    %733 = vmatprep.subr.mxu0 0.0
    %734 = vmatpush1.msra.mxu0 0.0
    %735 = vmatprep.subr.mxu0 0.0
    %736 = vmatpush1.msra.mxu0 0.0
    %737 = vmatprep.subr.mxu0 0.0
    %738 = vmatpush1.msra.mxu0 0.0
    %739 = vmatprep.subr.mxu0 0.0
    %740 = vmatpush1.msra.mxu0 0.0
    %741 = vmatprep.mubr.f32.mxu0 0.0
    %742 = vmatmul.mubr.f32.gmra.mrb[0].mxu0 %v672
    %v743 = vpop.f32.mrb[0].mxu0
    %v744 = vadd.f32 0.0, %v743
    %v745 = vpop.f32.mrb[0].mxu0
    %v746 = vadd.f32 0.0, %v745
    %747 = vdwg.mxu0
    %748 = vmatprep.subr.mxu0 0.0
    %749 = vmatpush1.msra.mxu0 %v465
    %750 = vmatprep.subr.mxu0 0.0
    %751 = vmatpush1.msra.mxu0 %v468
    %752 = vmatprep.subr.mxu0 0.0
    %753 = vmatpush1.msra.mxu0 %v471
    %754 = vmatprep.subr.mxu0 0.0
    %755 = vmatpush1.msra.mxu0 %v474
    %756 = vmatprep.subr.mxu0 0.0
    %757 = vmatpush1.msra.mxu0 %v477
    %758 = vmatprep.subr.mxu0 0.0
    %759 = vmatpush1.msra.mxu0 %v480
    %760 = vmatprep.subr.mxu0 0.0
    %761 = vmatpush1.msra.mxu0 %v483
    %762 = vmatprep.subr.mxu0 0.0
    %763 = vmatpush1.msra.mxu0 %v486
    %764 = vmatprep.subr.mxu0 0.0
    %765 = vmatpush1.msra.mxu0 %v489
    %766 = vmatprep.subr.mxu0 0.0
    %767 = vmatpush1.msra.mxu0 %v492
    %768 = vmatprep.subr.mxu0 0.0
    %769 = vmatpush1.msra.mxu0 %v495
    %770 = vmatprep.subr.mxu0 0.0
    %771 = vmatpush1.msra.mxu0 %v498
    %772 = vmatprep.subr.mxu0 0.0
    %773 = vmatpush1.msra.mxu0 %v501
    %774 = vmatprep.subr.mxu0 0.0
    %775 = vmatpush1.msra.mxu0 %v504
    %776 = vmatprep.subr.mxu0 0.0
    %777 = vmatpush1.msra.mxu0 %v507
    %778 = vmatprep.subr.mxu0 0.0
    %779 = vmatpush1.msra.mxu0 %v510
    %780 = vmatprep.subr.mxu0 0.0
    %781 = vmatpush1.msra.mxu0 0.0
    %782 = vmatprep.subr.mxu0 0.0
    %783 = vmatpush1.msra.mxu0 0.0
    %784 = vmatprep.subr.mxu0 0.0
    %785 = vmatpush1.msra.mxu0 0.0
    %786 = vmatprep.subr.mxu0 0.0
    %787 = vmatpush1.msra.mxu0 0.0
    %788 = vmatprep.subr.mxu0 0.0
    %789 = vmatpush1.msra.mxu0 0.0
    %790 = vmatprep.subr.mxu0 0.0
    %791 = vmatpush1.msra.mxu0 0.0
    %792 = vmatprep.subr.mxu0 0.0
    %793 = vmatpush1.msra.mxu0 0.0
    %794 = vmatprep.subr.mxu0 0.0
    %795 = vmatpush1.msra.mxu0 0.0
    %796 = vmatprep.subr.mxu0 0.0
    %797 = vmatpush1.msra.mxu0 0.0
    %798 = vmatprep.subr.mxu0 0.0
    %799 = vmatpush1.msra.mxu0 0.0
    %800 = vmatprep.subr.mxu0 0.0
    %801 = vmatpush1.msra.mxu0 0.0
    %802 = vmatprep.subr.mxu0 0.0
    %803 = vmatpush1.msra.mxu0 0.0
    %804 = vmatprep.subr.mxu0 0.0
    %805 = vmatpush1.msra.mxu0 0.0
    %806 = vmatprep.subr.mxu0 0.0
    %807 = vmatpush1.msra.mxu0 0.0
    %808 = vmatprep.subr.mxu0 0.0
    %809 = vmatpush1.msra.mxu0 0.0
    %810 = vmatprep.subr.mxu0 0.0
    %811 = vmatpush1.msra.mxu0 0.0
    %812 = vmatprep.mubr.f32.mxu0 0.0
    %813 = vmatmul.mubr.f32.gmra.mrb[0].mxu0 %v672
    %v814 = vpop.f32.mrb[0].mxu0
    %v815 = vadd.f32 0.0, %v814
    %v816 = vpop.f32.mrb[0].mxu0
    %817 = vdwg.mxu0
    %v818 = vadd.f32 %v674, %v744
    %v819 = vxor.u32 %v818, 2147483648
    %v820 = vmul.f32 %v819, 1.442695
    %v821 = vpow.pop %v820
    %v822 = vadd.f32 %v821, 1.0
    %v823 = vrcp.pop %v822
    %v824 = vmul.f32 1.0, %v823
    %v825 = vadd.f32 %v675, %v746
    %v826 = vxor.u32 %v825, 2147483648
    %v827 = vmul.f32 %v826, 1.442695
    %v828 = vpow.pop %v827
    %v829 = vadd.f32 %v828, 1.0
    %v830 = vrcp.pop %v829
    %v831 = vmul.f32 1.0, %v830
    %v832 = vadd.f32 %v815, %v458
    %v833 = vmul.f32 %v824, %v832
    %v834 = vadd.f32 %v676, %v833
    %v835 = vtanh.pop %v834
    %v836 = vsub.f32 %v672, %v835
    %v837 = vmul.f32 %v831, %v836
    %v838 = vadd.f32 %v835, %v837
    %s839 = scalar_lea.vmem [#allocation2], 48
    %v840 = vld [vmem:[%s839] sm:$0xff]
    %v841 = vld [vmem:[%s839 + $0x8] sm:$0xff]
    %v842 = vld [vmem:[%s839 + $0x10] sm:$0xff]
    %843 = vmatprep.subr.mxu0 %v464
    %844 = vmatpush1.msra.mxu0 %v463
    %845 = vmatprep.subr.mxu0 %v467
    %846 = vmatpush1.msra.mxu0 %v466
    %847 = vmatprep.subr.mxu0 %v470
    %848 = vmatpush1.msra.mxu0 %v469
    %849 = vmatprep.subr.mxu0 %v473
    %850 = vmatpush1.msra.mxu0 %v472
    %851 = vmatprep.subr.mxu0 %v476
    %852 = vmatpush1.msra.mxu0 %v475
    %853 = vmatprep.subr.mxu0 %v479
    %854 = vmatpush1.msra.mxu0 %v478
    %855 = vmatprep.subr.mxu0 %v482
    %856 = vmatpush1.msra.mxu0 %v481
    %857 = vmatprep.subr.mxu0 %v485
    %858 = vmatpush1.msra.mxu0 %v484
    %859 = vmatprep.subr.mxu0 %v488
    %860 = vmatpush1.msra.mxu0 %v487
    %861 = vmatprep.subr.mxu0 %v491
    %862 = vmatpush1.msra.mxu0 %v490
    %863 = vmatprep.subr.mxu0 %v494
    %864 = vmatpush1.msra.mxu0 %v493
    %865 = vmatprep.subr.mxu0 %v497
    %866 = vmatpush1.msra.mxu0 %v496
    %867 = vmatprep.subr.mxu0 %v500
    %868 = vmatpush1.msra.mxu0 %v499
    %869 = vmatprep.subr.mxu0 %v503
    %870 = vmatpush1.msra.mxu0 %v502
    %871 = vmatprep.subr.mxu0 %v506
    %872 = vmatpush1.msra.mxu0 %v505
    %873 = vmatprep.subr.mxu0 %v509
    %874 = vmatpush1.msra.mxu0 %v508
    %875 = vmatprep.subr.mxu0 0.0
    %876 = vmatpush1.msra.mxu0 0.0
    %877 = vmatprep.subr.mxu0 0.0
    %878 = vmatpush1.msra.mxu0 0.0
    %879 = vmatprep.subr.mxu0 0.0
    %880 = vmatpush1.msra.mxu0 0.0
    %881 = vmatprep.subr.mxu0 0.0
    %882 = vmatpush1.msra.mxu0 0.0
    %883 = vmatprep.subr.mxu0 0.0
    %884 = vmatpush1.msra.mxu0 0.0
    %885 = vmatprep.subr.mxu0 0.0
    %886 = vmatpush1.msra.mxu0 0.0
    %887 = vmatprep.subr.mxu0 0.0
    %888 = vmatpush1.msra.mxu0 0.0
    %889 = vmatprep.subr.mxu0 0.0
    %890 = vmatpush1.msra.mxu0 0.0
    %891 = vmatprep.subr.mxu0 0.0
    %892 = vmatpush1.msra.mxu0 0.0
    %893 = vmatprep.subr.mxu0 0.0
    %894 = vmatpush1.msra.mxu0 0.0
    %895 = vmatprep.subr.mxu0 0.0
    %896 = vmatpush1.msra.mxu0 0.0
    %897 = vmatprep.subr.mxu0 0.0
    %898 = vmatpush1.msra.mxu0 0.0
    %899 = vmatprep.subr.mxu0 0.0
    %900 = vmatpush1.msra.mxu0 0.0
    %901 = vmatprep.subr.mxu0 0.0
    %902 = vmatpush1.msra.mxu0 0.0
    %903 = vmatprep.subr.mxu0 0.0
    %904 = vmatpush1.msra.mxu0 0.0
    %905 = vmatprep.subr.mxu0 0.0
    %906 = vmatpush1.msra.mxu0 0.0
    %907 = vmatprep.mubr.f32.mxu0 0.0
    %908 = vmatmul.mubr.f32.gmra.mrb[0].mxu0 %v838
    %v909 = vpop.f32.mrb[0].mxu0
    %v910 = vadd.f32 0.0, %v909
    %v911 = vpop.f32.mrb[0].mxu0
    %v912 = vadd.f32 0.0, %v911
    %913 = vdwg.mxu0
    %914 = vmatprep.subr.mxu0 0.0
    %915 = vmatpush1.msra.mxu0 %v465
    %916 = vmatprep.subr.mxu0 0.0
    %917 = vmatpush1.msra.mxu0 %v468
    %918 = vmatprep.subr.mxu0 0.0
    %919 = vmatpush1.msra.mxu0 %v471
    %920 = vmatprep.subr.mxu0 0.0
    %921 = vmatpush1.msra.mxu0 %v474
    %922 = vmatprep.subr.mxu0 0.0
    %923 = vmatpush1.msra.mxu0 %v477
    %924 = vmatprep.subr.mxu0 0.0
    %925 = vmatpush1.msra.mxu0 %v480
    %926 = vmatprep.subr.mxu0 0.0
    %927 = vmatpush1.msra.mxu0 %v483
    %928 = vmatprep.subr.mxu0 0.0
    %929 = vmatpush1.msra.mxu0 %v486
    %930 = vmatprep.subr.mxu0 0.0
    %931 = vmatpush1.msra.mxu0 %v489
    %932 = vmatprep.subr.mxu0 0.0
    %933 = vmatpush1.msra.mxu0 %v492
    %934 = vmatprep.subr.mxu0 0.0
    %935 = vmatpush1.msra.mxu0 %v495
    %936 = vmatprep.subr.mxu0 0.0
    %937 = vmatpush1.msra.mxu0 %v498
    %938 = vmatprep.subr.mxu0 0.0
    %939 = vmatpush1.msra.mxu0 %v501
    %940 = vmatprep.subr.mxu0 0.0
    %941 = vmatpush1.msra.mxu0 %v504
    %942 = vmatprep.subr.mxu0 0.0
    %943 = vmatpush1.msra.mxu0 %v507
    %944 = vmatprep.subr.mxu0 0.0
    %945 = vmatpush1.msra.mxu0 %v510
    %946 = vmatprep.subr.mxu0 0.0
    %947 = vmatpush1.msra.mxu0 0.0
    %948 = vmatprep.subr.mxu0 0.0
    %949 = vmatpush1.msra.mxu0 0.0
    %950 = vmatprep.subr.mxu0 0.0
    %951 = vmatpush1.msra.mxu0 0.0
    %952 = vmatprep.subr.mxu0 0.0
    %953 = vmatpush1.msra.mxu0 0.0
    %954 = vmatprep.subr.mxu0 0.0
    %955 = vmatpush1.msra.mxu0 0.0
    %956 = vmatprep.subr.mxu0 0.0
    %957 = vmatpush1.msra.mxu0 0.0
    %958 = vmatprep.subr.mxu0 0.0
    %959 = vmatpush1.msra.mxu0 0.0
    %960 = vmatprep.subr.mxu0 0.0
    %961 = vmatpush1.msra.mxu0 0.0
    %962 = vmatprep.subr.mxu0 0.0
    %963 = vmatpush1.msra.mxu0 0.0
    %964 = vmatprep.subr.mxu0 0.0
    %965 = vmatpush1.msra.mxu0 0.0
    %966 = vmatprep.subr.mxu0 0.0
    %967 = vmatpush1.msra.mxu0 0.0
    %968 = vmatprep.subr.mxu0 0.0
    %969 = vmatpush1.msra.mxu0 0.0
    %970 = vmatprep.subr.mxu0 0.0
    %971 = vmatpush1.msra.mxu0 0.0
    %972 = vmatprep.subr.mxu0 0.0
    %973 = vmatpush1.msra.mxu0 0.0
    %974 = vmatprep.subr.mxu0 0.0
    %975 = vmatpush1.msra.mxu0 0.0
    %976 = vmatprep.subr.mxu0 0.0
    %977 = vmatpush1.msra.mxu0 0.0
    %978 = vmatprep.mubr.f32.mxu0 0.0
    %979 = vmatmul.mubr.f32.gmra.mrb[0].mxu0 %v838
    %v980 = vpop.f32.mrb[0].mxu0
    %v981 = vadd.f32 0.0, %v980
    %v982 = vpop.f32.mrb[0].mxu0
    %983 = vdwg.mxu0
    %v984 = vadd.f32 %v840, %v910
    %v985 = vxor.u32 %v984, 2147483648
    %v986 = vmul.f32 %v985, 1.442695
    %v987 = vpow.pop %v986
    %v988 = vadd.f32 %v987, 1.0
    %v989 = vrcp.pop %v988
    %v990 = vmul.f32 1.0, %v989
    %v991 = vadd.f32 %v841, %v912
    %v992 = vxor.u32 %v991, 2147483648
    %v993 = vmul.f32 %v992, 1.442695
    %v994 = vpow.pop %v993
    %v995 = vadd.f32 %v994, 1.0
    %v996 = vrcp.pop %v995
    %v997 = vmul.f32 1.0, %v996
    %v998 = vadd.f32 %v981, %v458
    %v999 = vmul.f32 %v990, %v998
    %v1000 = vadd.f32 %v842, %v999
    %v1001 = vtanh.pop %v1000
    %v1002 = vsub.f32 %v838, %v1001
    %v1003 = vmul.f32 %v997, %v1002
    %v1004 = vadd.f32 %v1001, %v1003
    %s1005 = scalar_lea.vmem [#allocation2], 72
    %v1006 = vld [vmem:[%s1005] sm:$0xff]
    %v1007 = vld [vmem:[%s1005 + $0x8] sm:$0xff]
    %v1008 = vld [vmem:[%s1005 + $0x10] sm:$0xff]
    %1009 = vmatprep.subr.mxu0 %v464
    %1010 = vmatpush1.msra.mxu0 %v463
    %1011 = vmatprep.subr.mxu0 %v467
    %1012 = vmatpush1.msra.mxu0 %v466
    %1013 = vmatprep.subr.mxu0 %v470
    %1014 = vmatpush1.msra.mxu0 %v469
    %1015 = vmatprep.subr.mxu0 %v473
    %1016 = vmatpush1.msra.mxu0 %v472
    %1017 = vmatprep.subr.mxu0 %v476
    %1018 = vmatpush1.msra.mxu0 %v475
    %1019 = vmatprep.subr.mxu0 %v479
    %1020 = vmatpush1.msra.mxu0 %v478
    %1021 = vmatprep.subr.mxu0 %v482
    %1022 = vmatpush1.msra.mxu0 %v481
    %1023 = vmatprep.subr.mxu0 %v485
    %1024 = vmatpush1.msra.mxu0 %v484
    %1025 = vmatprep.subr.mxu0 %v488
    %1026 = vmatpush1.msra.mxu0 %v487
    %1027 = vmatprep.subr.mxu0 %v491
    %1028 = vmatpush1.msra.mxu0 %v490
    %1029 = vmatprep.subr.mxu0 %v494
    %1030 = vmatpush1.msra.mxu0 %v493
    %1031 = vmatprep.subr.mxu0 %v497
    %1032 = vmatpush1.msra.mxu0 %v496
    %1033 = vmatprep.subr.mxu0 %v500
    %1034 = vmatpush1.msra.mxu0 %v499
    %1035 = vmatprep.subr.mxu0 %v503
    %1036 = vmatpush1.msra.mxu0 %v502
    %1037 = vmatprep.subr.mxu0 %v506
    %1038 = vmatpush1.msra.mxu0 %v505
    %1039 = vmatprep.subr.mxu0 %v509
    %1040 = vmatpush1.msra.mxu0 %v508
    %1041 = vmatprep.subr.mxu0 0.0
    %1042 = vmatpush1.msra.mxu0 0.0
    %1043 = vmatprep.subr.mxu0 0.0
    %1044 = vmatpush1.msra.mxu0 0.0
    %1045 = vmatprep.subr.mxu0 0.0
    %1046 = vmatpush1.msra.mxu0 0.0
    %1047 = vmatprep.subr.mxu0 0.0
    %1048 = vmatpush1.msra.mxu0 0.0
    %1049 = vmatprep.subr.mxu0 0.0
    %1050 = vmatpush1.msra.mxu0 0.0
    %1051 = vmatprep.subr.mxu0 0.0
    %1052 = vmatpush1.msra.mxu0 0.0
    %1053 = vmatprep.subr.mxu0 0.0
    %1054 = vmatpush1.msra.mxu0 0.0
    %1055 = vmatprep.subr.mxu0 0.0
    %1056 = vmatpush1.msra.mxu0 0.0
    %1057 = vmatprep.subr.mxu0 0.0
    %1058 = vmatpush1.msra.mxu0 0.0
    %1059 = vmatprep.subr.mxu0 0.0
    %1060 = vmatpush1.msra.mxu0 0.0
    %1061 = vmatprep.subr.mxu0 0.0
    %1062 = vmatpush1.msra.mxu0 0.0
    %1063 = vmatprep.subr.mxu0 0.0
    %1064 = vmatpush1.msra.mxu0 0.0
    %1065 = vmatprep.subr.mxu0 0.0
    %1066 = vmatpush1.msra.mxu0 0.0
    %1067 = vmatprep.subr.mxu0 0.0
    %1068 = vmatpush1.msra.mxu0 0.0
    %1069 = vmatprep.subr.mxu0 0.0
    %1070 = vmatpush1.msra.mxu0 0.0
    %1071 = vmatprep.subr.mxu0 0.0
    %1072 = vmatpush1.msra.mxu0 0.0
    %1073 = vmatprep.mubr.f32.mxu0 0.0
    %1074 = vmatmul.mubr.f32.gmra.mrb[0].mxu0 %v1004
    %v1075 = vpop.f32.mrb[0].mxu0
    %v1076 = vadd.f32 0.0, %v1075
    %v1077 = vpop.f32.mrb[0].mxu0
    %v1078 = vadd.f32 0.0, %v1077
    %1079 = vdwg.mxu0
    %1080 = vmatprep.subr.mxu0 0.0
    %1081 = vmatpush1.msra.mxu0 %v465
    %1082 = vmatprep.subr.mxu0 0.0
    %1083 = vmatpush1.msra.mxu0 %v468
    %1084 = vmatprep.subr.mxu0 0.0
    %1085 = vmatpush1.msra.mxu0 %v471
    %1086 = vmatprep.subr.mxu0 0.0
    %1087 = vmatpush1.msra.mxu0 %v474
    %1088 = vmatprep.subr.mxu0 0.0
    %1089 = vmatpush1.msra.mxu0 %v477
    %1090 = vmatprep.subr.mxu0 0.0
    %1091 = vmatpush1.msra.mxu0 %v480
    %1092 = vmatprep.subr.mxu0 0.0
    %1093 = vmatpush1.msra.mxu0 %v483
    %1094 = vmatprep.subr.mxu0 0.0
    %1095 = vmatpush1.msra.mxu0 %v486
    %1096 = vmatprep.subr.mxu0 0.0
    %1097 = vmatpush1.msra.mxu0 %v489
    %1098 = vmatprep.subr.mxu0 0.0
    %1099 = vmatpush1.msra.mxu0 %v492
    %1100 = vmatprep.subr.mxu0 0.0
    %1101 = vmatpush1.msra.mxu0 %v495
    %1102 = vmatprep.subr.mxu0 0.0
    %1103 = vmatpush1.msra.mxu0 %v498
    %1104 = vmatprep.subr.mxu0 0.0
    %1105 = vmatpush1.msra.mxu0 %v501
    %1106 = vmatprep.subr.mxu0 0.0
    %1107 = vmatpush1.msra.mxu0 %v504
    %1108 = vmatprep.subr.mxu0 0.0
    %1109 = vmatpush1.msra.mxu0 %v507
    %1110 = vmatprep.subr.mxu0 0.0
    %1111 = vmatpush1.msra.mxu0 %v510
    %1112 = vmatprep.subr.mxu0 0.0
    %1113 = vmatpush1.msra.mxu0 0.0
    %1114 = vmatprep.subr.mxu0 0.0
    %1115 = vmatpush1.msra.mxu0 0.0
    %1116 = vmatprep.subr.mxu0 0.0
    %1117 = vmatpush1.msra.mxu0 0.0
    %1118 = vmatprep.subr.mxu0 0.0
    %1119 = vmatpush1.msra.mxu0 0.0
    %1120 = vmatprep.subr.mxu0 0.0
    %1121 = vmatpush1.msra.mxu0 0.0
    %1122 = vmatprep.subr.mxu0 0.0
    %1123 = vmatpush1.msra.mxu0 0.0
    %1124 = vmatprep.subr.mxu0 0.0
    %1125 = vmatpush1.msra.mxu0 0.0
    %1126 = vmatprep.subr.mxu0 0.0
    %1127 = vmatpush1.msra.mxu0 0.0
    %1128 = vmatprep.subr.mxu0 0.0
    %1129 = vmatpush1.msra.mxu0 0.0
    %1130 = vmatprep.subr.mxu0 0.0
    %1131 = vmatpush1.msra.mxu0 0.0
    %1132 = vmatprep.subr.mxu0 0.0
    %1133 = vmatpush1.msra.mxu0 0.0
    %1134 = vmatprep.subr.mxu0 0.0
    %1135 = vmatpush1.msra.mxu0 0.0
    %1136 = vmatprep.subr.mxu0 0.0
    %1137 = vmatpush1.msra.mxu0 0.0
    %1138 = vmatprep.subr.mxu0 0.0
    %1139 = vmatpush1.msra.mxu0 0.0
    %1140 = vmatprep.subr.mxu0 0.0
    %1141 = vmatpush1.msra.mxu0 0.0
    %1142 = vmatprep.subr.mxu0 0.0
    %1143 = vmatpush1.msra.mxu0 0.0
    %1144 = vmatprep.mubr.f32.mxu0 0.0
    %1145 = vmatmul.mubr.f32.gmra.mrb[0].mxu0 %v1004
    %v1146 = vpop.f32.mrb[0].mxu0
    %v1147 = vadd.f32 0.0, %v1146
    %v1148 = vpop.f32.mrb[0].mxu0
    %1149 = vdwg.mxu0
    %v1150 = vadd.f32 %v1006, %v1076
    %v1151 = vxor.u32 %v1150, 2147483648
    %v1152 = vmul.f32 %v1151, 1.442695
    %v1153 = vpow.pop %v1152
    %v1154 = vadd.f32 %v1153, 1.0
    %v1155 = vrcp.pop %v1154
    %v1156 = vmul.f32 1.0, %v1155
    %v1157 = vadd.f32 %v1007, %v1078
    %v1158 = vxor.u32 %v1157, 2147483648
    %v1159 = vmul.f32 %v1158, 1.442695
    %v1160 = vpow.pop %v1159
    %v1161 = vadd.f32 %v1160, 1.0
    %v1162 = vrcp.pop %v1161
    %v1163 = vmul.f32 1.0, %v1162
    %v1164 = vadd.f32 %v1147, %v458
    %v1165 = vmul.f32 %v1156, %v1164
    %v1166 = vadd.f32 %v1008, %v1165
    %v1167 = vtanh.pop %v1166
    %v1168 = vsub.f32 %v1004, %v1167
    %v1169 = vmul.f32 %v1163, %v1168
    %v1170 = vadd.f32 %v1167, %v1169
    %s1171 = scalar_lea.vmem [#allocation2], 96
    %v1172 = vld [vmem:[%s1171] sm:$0xff]
    %v1173 = vld [vmem:[%s1171 + $0x8] sm:$0xff]
    %v1174 = vld [vmem:[%s1171 + $0x10] sm:$0xff]
    %1175 = vmatprep.subr.mxu0 %v464
    %1176 = vmatpush1.msra.mxu0 %v463
    %1177 = vmatprep.subr.mxu0 %v467
    %1178 = vmatpush1.msra.mxu0 %v466
    %1179 = vmatprep.subr.mxu0 %v470
    %1180 = vmatpush1.msra.mxu0 %v469
    %1181 = vmatprep.subr.mxu0 %v473
    %1182 = vmatpush1.msra.mxu0 %v472
    %1183 = vmatprep.subr.mxu0 %v476
    %1184 = vmatpush1.msra.mxu0 %v475
    %1185 = vmatprep.subr.mxu0 %v479
    %1186 = vmatpush1.msra.mxu0 %v478
    %1187 = vmatprep.subr.mxu0 %v482
    %1188 = vmatpush1.msra.mxu0 %v481
    %1189 = vmatprep.subr.mxu0 %v485
    %1190 = vmatpush1.msra.mxu0 %v484
    %1191 = vmatprep.subr.mxu0 %v488
    %1192 = vmatpush1.msra.mxu0 %v487
    %1193 = vmatprep.subr.mxu0 %v491
    %1194 = vmatpush1.msra.mxu0 %v490
    %1195 = vmatprep.subr.mxu0 %v494
    %1196 = vmatpush1.msra.mxu0 %v493
    %1197 = vmatprep.subr.mxu0 %v497
    %1198 = vmatpush1.msra.mxu0 %v496
    %1199 = vmatprep.subr.mxu0 %v500
    %1200 = vmatpush1.msra.mxu0 %v499
    %1201 = vmatprep.subr.mxu0 %v503
    %1202 = vmatpush1.msra.mxu0 %v502
    %1203 = vmatprep.subr.mxu0 %v506
    %1204 = vmatpush1.msra.mxu0 %v505
    %1205 = vmatprep.subr.mxu0 %v509
    %1206 = vmatpush1.msra.mxu0 %v508
    %1207 = vmatprep.subr.mxu0 0.0
    %1208 = vmatpush1.msra.mxu0 0.0
    %1209 = vmatprep.subr.mxu0 0.0
    %1210 = vmatpush1.msra.mxu0 0.0
    %1211 = vmatprep.subr.mxu0 0.0
    %1212 = vmatpush1.msra.mxu0 0.0
    %1213 = vmatprep.subr.mxu0 0.0
    %1214 = vmatpush1.msra.mxu0 0.0
    %1215 = vmatprep.subr.mxu0 0.0
    %1216 = vmatpush1.msra.mxu0 0.0
    %1217 = vmatprep.subr.mxu0 0.0
    %1218 = vmatpush1.msra.mxu0 0.0
    %1219 = vmatprep.subr.mxu0 0.0
    %1220 = vmatpush1.msra.mxu0 0.0
    %1221 = vmatprep.subr.mxu0 0.0
    %1222 = vmatpush1.msra.mxu0 0.0
    %1223 = vmatprep.subr.mxu0 0.0
    %1224 = vmatpush1.msra.mxu0 0.0
    %1225 = vmatprep.subr.mxu0 0.0
    %1226 = vmatpush1.msra.mxu0 0.0
    %1227 = vmatprep.subr.mxu0 0.0
    %1228 = vmatpush1.msra.mxu0 0.0
    %1229 = vmatprep.subr.mxu0 0.0
    %1230 = vmatpush1.msra.mxu0 0.0
    %1231 = vmatprep.subr.mxu0 0.0
    %1232 = vmatpush1.msra.mxu0 0.0
    %1233 = vmatprep.subr.mxu0 0.0
    %1234 = vmatpush1.msra.mxu0 0.0
    %1235 = vmatprep.subr.mxu0 0.0
    %1236 = vmatpush1.msra.mxu0 0.0
    %1237 = vmatprep.subr.mxu0 0.0
    %1238 = vmatpush1.msra.mxu0 0.0
    %1239 = vmatprep.mubr.f32.mxu0 0.0
    %1240 = vmatmul.mubr.f32.gmra.mrb[0].mxu0 %v1170
    %v1241 = vpop.f32.mrb[0].mxu0
    %v1242 = vadd.f32 0.0, %v1241
    %v1243 = vpop.f32.mrb[0].mxu0
    %v1244 = vadd.f32 0.0, %v1243
    %1245 = vdwg.mxu0
    %1246 = vmatprep.subr.mxu0 0.0
    %1247 = vmatpush1.msra.mxu0 %v465
    %1248 = vmatprep.subr.mxu0 0.0
    %1249 = vmatpush1.msra.mxu0 %v468
    %1250 = vmatprep.subr.mxu0 0.0
    %1251 = vmatpush1.msra.mxu0 %v471
    %1252 = vmatprep.subr.mxu0 0.0
    %1253 = vmatpush1.msra.mxu0 %v474
    %1254 = vmatprep.subr.mxu0 0.0
    %1255 = vmatpush1.msra.mxu0 %v477
    %1256 = vmatprep.subr.mxu0 0.0
    %1257 = vmatpush1.msra.mxu0 %v480
    %1258 = vmatprep.subr.mxu0 0.0
    %1259 = vmatpush1.msra.mxu0 %v483
    %1260 = vmatprep.subr.mxu0 0.0
    %1261 = vmatpush1.msra.mxu0 %v486
    %1262 = vmatprep.subr.mxu0 0.0
    %1263 = vmatpush1.msra.mxu0 %v489
    %1264 = vmatprep.subr.mxu0 0.0
    %1265 = vmatpush1.msra.mxu0 %v492
    %1266 = vmatprep.subr.mxu0 0.0
    %1267 = vmatpush1.msra.mxu0 %v495
    %1268 = vmatprep.subr.mxu0 0.0
    %1269 = vmatpush1.msra.mxu0 %v498
    %1270 = vmatprep.subr.mxu0 0.0
    %1271 = vmatpush1.msra.mxu0 %v501
    %1272 = vmatprep.subr.mxu0 0.0
    %1273 = vmatpush1.msra.mxu0 %v504
    %1274 = vmatprep.subr.mxu0 0.0
    %1275 = vmatpush1.msra.mxu0 %v507
    %1276 = vmatprep.subr.mxu0 0.0
    %1277 = vmatpush1.msra.mxu0 %v510
    %1278 = vmatprep.subr.mxu0 0.0
    %1279 = vmatpush1.msra.mxu0 0.0
    %1280 = vmatprep.subr.mxu0 0.0
    %1281 = vmatpush1.msra.mxu0 0.0
    %1282 = vmatprep.subr.mxu0 0.0
    %1283 = vmatpush1.msra.mxu0 0.0
    %1284 = vmatprep.subr.mxu0 0.0
    %1285 = vmatpush1.msra.mxu0 0.0
    %1286 = vmatprep.subr.mxu0 0.0
    %1287 = vmatpush1.msra.mxu0 0.0
    %1288 = vmatprep.subr.mxu0 0.0
    %1289 = vmatpush1.msra.mxu0 0.0
    %1290 = vmatprep.subr.mxu0 0.0
    %1291 = vmatpush1.msra.mxu0 0.0
    %1292 = vmatprep.subr.mxu0 0.0
    %1293 = vmatpush1.msra.mxu0 0.0
    %1294 = vmatprep.subr.mxu0 0.0
    %1295 = vmatpush1.msra.mxu0 0.0
    %1296 = vmatprep.subr.mxu0 0.0
    %1297 = vmatpush1.msra.mxu0 0.0
    %1298 = vmatprep.subr.mxu0 0.0
    %1299 = vmatpush1.msra.mxu0 0.0
    %1300 = vmatprep.subr.mxu0 0.0
    %1301 = vmatpush1.msra.mxu0 0.0
    %1302 = vmatprep.subr.mxu0 0.0
    %1303 = vmatpush1.msra.mxu0 0.0
    %1304 = vmatprep.subr.mxu0 0.0
    %1305 = vmatpush1.msra.mxu0 0.0
    %1306 = vmatprep.subr.mxu0 0.0
    %1307 = vmatpush1.msra.mxu0 0.0
    %1308 = vmatprep.subr.mxu0 0.0
    %1309 = vmatpush1.msra.mxu0 0.0
    %1310 = vmatprep.mubr.f32.mxu0 0.0
    %1311 = vmatmul.mubr.f32.gmra.mrb[0].mxu0 %v1170
    %v1312 = vpop.f32.mrb[0].mxu0
    %v1313 = vadd.f32 0.0, %v1312
    %v1314 = vpop.f32.mrb[0].mxu0
    %1315 = vdwg.mxu0
    %v1316 = vadd.f32 %v1172, %v1242
    %v1317 = vxor.u32 %v1316, 2147483648
    %v1318 = vmul.f32 %v1317, 1.442695
    %v1319 = vpow.pop %v1318
    %v1320 = vadd.f32 %v1319, 1.0
    %v1321 = vrcp.pop %v1320
    %v1322 = vmul.f32 1.0, %v1321
    %v1323 = vadd.f32 %v1173, %v1244
    %v1324 = vxor.u32 %v1323, 2147483648
    %v1325 = vmul.f32 %v1324, 1.442695
    %v1326 = vpow.pop %v1325
    %v1327 = vadd.f32 %v1326, 1.0
    %v1328 = vrcp.pop %v1327
    %v1329 = vmul.f32 1.0, %v1328
    %v1330 = vadd.f32 %v1313, %v458
    %v1331 = vmul.f32 %v1322, %v1330
    %v1332 = vadd.f32 %v1174, %v1331
    %v1333 = vtanh.pop %v1332
    %v1334 = vsub.f32 %v1170, %v1333
    %v1335 = vmul.f32 %v1329, %v1334
    %v1336 = vadd.f32 %v1333, %v1335
    %s1337 = scalar_lea.vmem [#allocation2], 120
    %v1338 = vld [vmem:[%s1337] sm:$0xff]
    %v1339 = vld [vmem:[%s1337 + $0x8] sm:$0xff]
    %v1340 = vld [vmem:[%s1337 + $0x10] sm:$0xff]
    %1341 = vmatprep.subr.mxu0 %v464
    %1342 = vmatpush1.msra.mxu0 %v463
    %1343 = vmatprep.subr.mxu0 %v467
    %1344 = vmatpush1.msra.mxu0 %v466
    %1345 = vmatprep.subr.mxu0 %v470
    %1346 = vmatpush1.msra.mxu0 %v469
    %1347 = vmatprep.subr.mxu0 %v473
    %1348 = vmatpush1.msra.mxu0 %v472
    %1349 = vmatprep.subr.mxu0 %v476
    %1350 = vmatpush1.msra.mxu0 %v475
    %1351 = vmatprep.subr.mxu0 %v479
    %1352 = vmatpush1.msra.mxu0 %v478
    %1353 = vmatprep.subr.mxu0 %v482
    %1354 = vmatpush1.msra.mxu0 %v481
    %1355 = vmatprep.subr.mxu0 %v485
    %1356 = vmatpush1.msra.mxu0 %v484
    %1357 = vmatprep.subr.mxu0 %v488
    %1358 = vmatpush1.msra.mxu0 %v487
    %1359 = vmatprep.subr.mxu0 %v491
    %1360 = vmatpush1.msra.mxu0 %v490
    %1361 = vmatprep.subr.mxu0 %v494
    %1362 = vmatpush1.msra.mxu0 %v493
    %1363 = vmatprep.subr.mxu0 %v497
    %1364 = vmatpush1.msra.mxu0 %v496
    %1365 = vmatprep.subr.mxu0 %v500
    %1366 = vmatpush1.msra.mxu0 %v499
    %1367 = vmatprep.subr.mxu0 %v503
    %1368 = vmatpush1.msra.mxu0 %v502
    %1369 = vmatprep.subr.mxu0 %v506
    %1370 = vmatpush1.msra.mxu0 %v505
    %1371 = vmatprep.subr.mxu0 %v509
    %1372 = vmatpush1.msra.mxu0 %v508
    %1373 = vmatprep.subr.mxu0 0.0
    %1374 = vmatpush1.msra.mxu0 0.0
    %1375 = vmatprep.subr.mxu0 0.0
    %1376 = vmatpush1.msra.mxu0 0.0
    %1377 = vmatprep.subr.mxu0 0.0
    %1378 = vmatpush1.msra.mxu0 0.0
    %1379 = vmatprep.subr.mxu0 0.0
    %1380 = vmatpush1.msra.mxu0 0.0
    %1381 = vmatprep.subr.mxu0 0.0
    %1382 = vmatpush1.msra.mxu0 0.0
    %1383 = vmatprep.subr.mxu0 0.0
    %1384 = vmatpush1.msra.mxu0 0.0
    %1385 = vmatprep.subr.mxu0 0.0
    %1386 = vmatpush1.msra.mxu0 0.0
    %1387 = vmatprep.subr.mxu0 0.0
    %1388 = vmatpush1.msra.mxu0 0.0
    %1389 = vmatprep.subr.mxu0 0.0
    %1390 = vmatpush1.msra.mxu0 0.0
    %1391 = vmatprep.subr.mxu0 0.0
    %1392 = vmatpush1.msra.mxu0 0.0
    %1393 = vmatprep.subr.mxu0 0.0
    %1394 = vmatpush1.msra.mxu0 0.0
    %1395 = vmatprep.subr.mxu0 0.0
    %1396 = vmatpush1.msra.mxu0 0.0
    %1397 = vmatprep.subr.mxu0 0.0
    %1398 = vmatpush1.msra.mxu0 0.0
    %1399 = vmatprep.subr.mxu0 0.0
    %1400 = vmatpush1.msra.mxu0 0.0
    %1401 = vmatprep.subr.mxu0 0.0
    %1402 = vmatpush1.msra.mxu0 0.0
    %1403 = vmatprep.subr.mxu0 0.0
    %1404 = vmatpush1.msra.mxu0 0.0
    %1405 = vmatprep.mubr.f32.mxu0 0.0
    %1406 = vmatmul.mubr.f32.gmra.mrb[0].mxu0 %v1336
    %v1407 = vpop.f32.mrb[0].mxu0
    %v1408 = vadd.f32 0.0, %v1407
    %v1409 = vpop.f32.mrb[0].mxu0
    %v1410 = vadd.f32 0.0, %v1409
    %1411 = vdwg.mxu0
    %1412 = vmatprep.subr.mxu0 0.0
    %1413 = vmatpush1.msra.mxu0 %v465
    %1414 = vmatprep.subr.mxu0 0.0
    %1415 = vmatpush1.msra.mxu0 %v468
    %1416 = vmatprep.subr.mxu0 0.0
    %1417 = vmatpush1.msra.mxu0 %v471
    %1418 = vmatprep.subr.mxu0 0.0
    %1419 = vmatpush1.msra.mxu0 %v474
    %1420 = vmatprep.subr.mxu0 0.0
    %1421 = vmatpush1.msra.mxu0 %v477
    %1422 = vmatprep.subr.mxu0 0.0
    %1423 = vmatpush1.msra.mxu0 %v480
    %1424 = vmatprep.subr.mxu0 0.0
    %1425 = vmatpush1.msra.mxu0 %v483
    %1426 = vmatprep.subr.mxu0 0.0
    %1427 = vmatpush1.msra.mxu0 %v486
    %1428 = vmatprep.subr.mxu0 0.0
    %1429 = vmatpush1.msra.mxu0 %v489
    %1430 = vmatprep.subr.mxu0 0.0
    %1431 = vmatpush1.msra.mxu0 %v492
    %1432 = vmatprep.subr.mxu0 0.0
    %1433 = vmatpush1.msra.mxu0 %v495
    %1434 = vmatprep.subr.mxu0 0.0
    %1435 = vmatpush1.msra.mxu0 %v498
    %1436 = vmatprep.subr.mxu0 0.0
    %1437 = vmatpush1.msra.mxu0 %v501
    %1438 = vmatprep.subr.mxu0 0.0
    %1439 = vmatpush1.msra.mxu0 %v504
    %1440 = vmatprep.subr.mxu0 0.0
    %1441 = vmatpush1.msra.mxu0 %v507
    %1442 = vmatprep.subr.mxu0 0.0
    %1443 = vmatpush1.msra.mxu0 %v510
    %1444 = vmatprep.subr.mxu0 0.0
    %1445 = vmatpush1.msra.mxu0 0.0
    %1446 = vmatprep.subr.mxu0 0.0
    %1447 = vmatpush1.msra.mxu0 0.0
    %1448 = vmatprep.subr.mxu0 0.0
    %1449 = vmatpush1.msra.mxu0 0.0
    %1450 = vmatprep.subr.mxu0 0.0
    %1451 = vmatpush1.msra.mxu0 0.0
    %1452 = vmatprep.subr.mxu0 0.0
    %1453 = vmatpush1.msra.mxu0 0.0
    %1454 = vmatprep.subr.mxu0 0.0
    %1455 = vmatpush1.msra.mxu0 0.0
    %1456 = vmatprep.subr.mxu0 0.0
    %1457 = vmatpush1.msra.mxu0 0.0
    %1458 = vmatprep.subr.mxu0 0.0
    %1459 = vmatpush1.msra.mxu0 0.0
    %1460 = vmatprep.subr.mxu0 0.0
    %1461 = vmatpush1.msra.mxu0 0.0
    %1462 = vmatprep.subr.mxu0 0.0
    %1463 = vmatpush1.msra.mxu0 0.0
    %1464 = vmatprep.subr.mxu0 0.0
    %1465 = vmatpush1.msra.mxu0 0.0
    %1466 = vmatprep.subr.mxu0 0.0
    %1467 = vmatpush1.msra.mxu0 0.0
    %1468 = vmatprep.subr.mxu0 0.0
    %1469 = vmatpush1.msra.mxu0 0.0
    %1470 = vmatprep.subr.mxu0 0.0
    %1471 = vmatpush1.msra.mxu0 0.0
    %1472 = vmatprep.subr.mxu0 0.0
    %1473 = vmatpush1.msra.mxu0 0.0
    %1474 = vmatprep.subr.mxu0 0.0
    %1475 = vmatpush1.msra.mxu0 0.0
    %1476 = vmatprep.mubr.f32.mxu0 0.0
    %1477 = vmatmul.mubr.f32.gmra.mrb[0].mxu0 %v1336
    %v1478 = vpop.f32.mrb[0].mxu0
    %v1479 = vadd.f32 0.0, %v1478
    %v1480 = vpop.f32.mrb[0].mxu0
    %1481 = vdwg.mxu0
    %v1482 = vadd.f32 %v1338, %v1408
    %v1483 = vxor.u32 %v1482, 2147483648
    %v1484 = vmul.f32 %v1483, 1.442695
    %v1485 = vpow.pop %v1484
    %v1486 = vadd.f32 %v1485, 1.0
    %v1487 = vrcp.pop %v1486
    %v1488 = vmul.f32 1.0, %v1487
    %v1489 = vadd.f32 %v1339, %v1410
    %v1490 = vxor.u32 %v1489, 2147483648
    %v1491 = vmul.f32 %v1490, 1.442695
    %v1492 = vpow.pop %v1491
    %v1493 = vadd.f32 %v1492, 1.0
    %v1494 = vrcp.pop %v1493
    %v1495 = vmul.f32 1.0, %v1494
    %v1496 = vadd.f32 %v1479, %v458
    %v1497 = vmul.f32 %v1488, %v1496
    %v1498 = vadd.f32 %v1340, %v1497
    %v1499 = vtanh.pop %v1498
    %v1500 = vsub.f32 %v1336, %v1499
    %v1501 = vmul.f32 %v1495, %v1500
    %v1502 = vadd.f32 %v1499, %v1501
    %s1503 = scalar_lea.vmem [#allocation2], 144
    %v1504 = vld [vmem:[%s1503] sm:$0xff]
    %v1505 = vld [vmem:[%s1503 + $0x8] sm:$0xff]
    %v1506 = vld [vmem:[%s1503 + $0x10] sm:$0xff]
    %1507 = vmatprep.subr.mxu0 %v464
    %1508 = vmatpush1.msra.mxu0 %v463
    %1509 = vmatprep.subr.mxu0 %v467
    %1510 = vmatpush1.msra.mxu0 %v466
    %1511 = vmatprep.subr.mxu0 %v470
    %1512 = vmatpush1.msra.mxu0 %v469
    %1513 = vmatprep.subr.mxu0 %v473
    %1514 = vmatpush1.msra.mxu0 %v472
    %1515 = vmatprep.subr.mxu0 %v476
    %1516 = vmatpush1.msra.mxu0 %v475
    %1517 = vmatprep.subr.mxu0 %v479
    %1518 = vmatpush1.msra.mxu0 %v478
    %1519 = vmatprep.subr.mxu0 %v482
    %1520 = vmatpush1.msra.mxu0 %v481
    %1521 = vmatprep.subr.mxu0 %v485
    %1522 = vmatpush1.msra.mxu0 %v484
    %1523 = vmatprep.subr.mxu0 %v488
    %1524 = vmatpush1.msra.mxu0 %v487
    %1525 = vmatprep.subr.mxu0 %v491
    %1526 = vmatpush1.msra.mxu0 %v490
    %1527 = vmatprep.subr.mxu0 %v494
    %1528 = vmatpush1.msra.mxu0 %v493
    %1529 = vmatprep.subr.mxu0 %v497
    %1530 = vmatpush1.msra.mxu0 %v496
    %1531 = vmatprep.subr.mxu0 %v500
    %1532 = vmatpush1.msra.mxu0 %v499
    %1533 = vmatprep.subr.mxu0 %v503
    %1534 = vmatpush1.msra.mxu0 %v502
    %1535 = vmatprep.subr.mxu0 %v506
    %1536 = vmatpush1.msra.mxu0 %v505
    %1537 = vmatprep.subr.mxu0 %v509
    %1538 = vmatpush1.msra.mxu0 %v508
    %1539 = vmatprep.subr.mxu0 0.0
    %1540 = vmatpush1.msra.mxu0 0.0
    %1541 = vmatprep.subr.mxu0 0.0
    %1542 = vmatpush1.msra.mxu0 0.0
    %1543 = vmatprep.subr.mxu0 0.0
    %1544 = vmatpush1.msra.mxu0 0.0
    %1545 = vmatprep.subr.mxu0 0.0
    %1546 = vmatpush1.msra.mxu0 0.0
    %1547 = vmatprep.subr.mxu0 0.0
    %1548 = vmatpush1.msra.mxu0 0.0
    %1549 = vmatprep.subr.mxu0 0.0
    %1550 = vmatpush1.msra.mxu0 0.0
    %1551 = vmatprep.subr.mxu0 0.0
    %1552 = vmatpush1.msra.mxu0 0.0
    %1553 = vmatprep.subr.mxu0 0.0
    %1554 = vmatpush1.msra.mxu0 0.0
    %1555 = vmatprep.subr.mxu0 0.0
    %1556 = vmatpush1.msra.mxu0 0.0
    %1557 = vmatprep.subr.mxu0 0.0
    %1558 = vmatpush1.msra.mxu0 0.0
    %1559 = vmatprep.subr.mxu0 0.0
    %1560 = vmatpush1.msra.mxu0 0.0
    %1561 = vmatprep.subr.mxu0 0.0
    %1562 = vmatpush1.msra.mxu0 0.0
    %1563 = vmatprep.subr.mxu0 0.0
    %1564 = vmatpush1.msra.mxu0 0.0
    %1565 = vmatprep.subr.mxu0 0.0
    %1566 = vmatpush1.msra.mxu0 0.0
    %1567 = vmatprep.subr.mxu0 0.0
    %1568 = vmatpush1.msra.mxu0 0.0
    %1569 = vmatprep.subr.mxu0 0.0
    %1570 = vmatpush1.msra.mxu0 0.0
    %1571 = vmatprep.mubr.f32.mxu0 0.0
    %1572 = vmatmul.mubr.f32.gmra.mrb[0].mxu0 %v1502
    %v1573 = vpop.f32.mrb[0].mxu0
    %v1574 = vadd.f32 0.0, %v1573
    %v1575 = vpop.f32.mrb[0].mxu0
    %v1576 = vadd.f32 0.0, %v1575
    %1577 = vdwg.mxu0
    %1578 = vmatprep.subr.mxu0 0.0
    %1579 = vmatpush1.msra.mxu0 %v465
    %1580 = vmatprep.subr.mxu0 0.0
    %1581 = vmatpush1.msra.mxu0 %v468
    %1582 = vmatprep.subr.mxu0 0.0
    %1583 = vmatpush1.msra.mxu0 %v471
    %1584 = vmatprep.subr.mxu0 0.0
    %1585 = vmatpush1.msra.mxu0 %v474
    %1586 = vmatprep.subr.mxu0 0.0
    %1587 = vmatpush1.msra.mxu0 %v477
    %1588 = vmatprep.subr.mxu0 0.0
    %1589 = vmatpush1.msra.mxu0 %v480
    %1590 = vmatprep.subr.mxu0 0.0
    %1591 = vmatpush1.msra.mxu0 %v483
    %1592 = vmatprep.subr.mxu0 0.0
    %1593 = vmatpush1.msra.mxu0 %v486
    %1594 = vmatprep.subr.mxu0 0.0
    %1595 = vmatpush1.msra.mxu0 %v489
    %1596 = vmatprep.subr.mxu0 0.0
    %1597 = vmatpush1.msra.mxu0 %v492
    %1598 = vmatprep.subr.mxu0 0.0
    %1599 = vmatpush1.msra.mxu0 %v495
    %1600 = vmatprep.subr.mxu0 0.0
    %1601 = vmatpush1.msra.mxu0 %v498
    %1602 = vmatprep.subr.mxu0 0.0
    %1603 = vmatpush1.msra.mxu0 %v501
    %1604 = vmatprep.subr.mxu0 0.0
    %1605 = vmatpush1.msra.mxu0 %v504
    %1606 = vmatprep.subr.mxu0 0.0
    %1607 = vmatpush1.msra.mxu0 %v507
    %1608 = vmatprep.subr.mxu0 0.0
    %1609 = vmatpush1.msra.mxu0 %v510
    %1610 = vmatprep.subr.mxu0 0.0
    %1611 = vmatpush1.msra.mxu0 0.0
    %1612 = vmatprep.subr.mxu0 0.0
    %1613 = vmatpush1.msra.mxu0 0.0
    %1614 = vmatprep.subr.mxu0 0.0
    %1615 = vmatpush1.msra.mxu0 0.0
    %1616 = vmatprep.subr.mxu0 0.0
    %1617 = vmatpush1.msra.mxu0 0.0
    %1618 = vmatprep.subr.mxu0 0.0
    %1619 = vmatpush1.msra.mxu0 0.0
    %1620 = vmatprep.subr.mxu0 0.0
    %1621 = vmatpush1.msra.mxu0 0.0
    %1622 = vmatprep.subr.mxu0 0.0
    %1623 = vmatpush1.msra.mxu0 0.0
    %1624 = vmatprep.subr.mxu0 0.0
    %1625 = vmatpush1.msra.mxu0 0.0
    %1626 = vmatprep.subr.mxu0 0.0
    %1627 = vmatpush1.msra.mxu0 0.0
    %1628 = vmatprep.subr.mxu0 0.0
    %1629 = vmatpush1.msra.mxu0 0.0
    %1630 = vmatprep.subr.mxu0 0.0
    %1631 = vmatpush1.msra.mxu0 0.0
    %1632 = vmatprep.subr.mxu0 0.0
    %1633 = vmatpush1.msra.mxu0 0.0
    %1634 = vmatprep.subr.mxu0 0.0
    %1635 = vmatpush1.msra.mxu0 0.0
    %1636 = vmatprep.subr.mxu0 0.0
    %1637 = vmatpush1.msra.mxu0 0.0
    %1638 = vmatprep.subr.mxu0 0.0
    %1639 = vmatpush1.msra.mxu0 0.0
    %1640 = vmatprep.subr.mxu0 0.0
    %1641 = vmatpush1.msra.mxu0 0.0
    %1642 = vmatprep.mubr.f32.mxu0 0.0
    %1643 = vmatmul.mubr.f32.gmra.mrb[0].mxu0 %v1502
    %v1644 = vpop.f32.mrb[0].mxu0
    %v1645 = vadd.f32 0.0, %v1644
    %v1646 = vpop.f32.mrb[0].mxu0
    %1647 = vdwg.mxu0
    %v1648 = vadd.f32 %v1504, %v1574
    %v1649 = vxor.u32 %v1648, 2147483648
    %v1650 = vmul.f32 %v1649, 1.442695
    %v1651 = vpow.pop %v1650
    %v1652 = vadd.f32 %v1651, 1.0
    %v1653 = vrcp.pop %v1652
    %v1654 = vmul.f32 1.0, %v1653
    %v1655 = vadd.f32 %v1505, %v1576
    %v1656 = vxor.u32 %v1655, 2147483648
    %v1657 = vmul.f32 %v1656, 1.442695
    %v1658 = vpow.pop %v1657
    %v1659 = vadd.f32 %v1658, 1.0
    %v1660 = vrcp.pop %v1659
    %v1661 = vmul.f32 1.0, %v1660
    %v1662 = vadd.f32 %v1645, %v458
    %v1663 = vmul.f32 %v1654, %v1662
    %v1664 = vadd.f32 %v1506, %v1663
    %v1665 = vtanh.pop %v1664
    %v1666 = vsub.f32 %v1502, %v1665
    %v1667 = vmul.f32 %v1661, %v1666
    %v1668 = vadd.f32 %v1665, %v1667
    %s1669 = scalar_lea.vmem [#allocation2], 168
    %v1670 = vld [vmem:[%s1669] sm:$0xff]
    %v1671 = vld [vmem:[%s1669 + $0x8] sm:$0xff]
    %v1672 = vld [vmem:[%s1669 + $0x10] sm:$0xff]
    %1673 = vmatprep.subr.mxu0 %v464
    %1674 = vmatpush1.msra.mxu0 %v463
    %1675 = vmatprep.subr.mxu0 %v467
    %1676 = vmatpush1.msra.mxu0 %v466
    %1677 = vmatprep.subr.mxu0 %v470
    %1678 = vmatpush1.msra.mxu0 %v469
    %1679 = vmatprep.subr.mxu0 %v473
    %1680 = vmatpush1.msra.mxu0 %v472
    %1681 = vmatprep.subr.mxu0 %v476
    %1682 = vmatpush1.msra.mxu0 %v475
    %1683 = vmatprep.subr.mxu0 %v479
    %1684 = vmatpush1.msra.mxu0 %v478
    %1685 = vmatprep.subr.mxu0 %v482
    %1686 = vmatpush1.msra.mxu0 %v481
    %1687 = vmatprep.subr.mxu0 %v485
    %1688 = vmatpush1.msra.mxu0 %v484
    %1689 = vmatprep.subr.mxu0 %v488
    %1690 = vmatpush1.msra.mxu0 %v487
    %1691 = vmatprep.subr.mxu0 %v491
    %1692 = vmatpush1.msra.mxu0 %v490
    %1693 = vmatprep.subr.mxu0 %v494
    %1694 = vmatpush1.msra.mxu0 %v493
    %1695 = vmatprep.subr.mxu0 %v497
    %1696 = vmatpush1.msra.mxu0 %v496
    %1697 = vmatprep.subr.mxu0 %v500
    %1698 = vmatpush1.msra.mxu0 %v499
    %1699 = vmatprep.subr.mxu0 %v503
    %1700 = vmatpush1.msra.mxu0 %v502
    %1701 = vmatprep.subr.mxu0 %v506
    %1702 = vmatpush1.msra.mxu0 %v505
    %1703 = vmatprep.subr.mxu0 %v509
    %1704 = vmatpush1.msra.mxu0 %v508
    %1705 = vmatprep.subr.mxu0 0.0
    %1706 = vmatpush1.msra.mxu0 0.0
    %1707 = vmatprep.subr.mxu0 0.0
    %1708 = vmatpush1.msra.mxu0 0.0
    %1709 = vmatprep.subr.mxu0 0.0
    %1710 = vmatpush1.msra.mxu0 0.0
    %1711 = vmatprep.subr.mxu0 0.0
    %1712 = vmatpush1.msra.mxu0 0.0
    %1713 = vmatprep.subr.mxu0 0.0
    %1714 = vmatpush1.msra.mxu0 0.0
    %1715 = vmatprep.subr.mxu0 0.0
    %1716 = vmatpush1.msra.mxu0 0.0
    %1717 = vmatprep.subr.mxu0 0.0
    %1718 = vmatpush1.msra.mxu0 0.0
    %1719 = vmatprep.subr.mxu0 0.0
    %1720 = vmatpush1.msra.mxu0 0.0
    %1721 = vmatprep.subr.mxu0 0.0
    %1722 = vmatpush1.msra.mxu0 0.0
    %1723 = vmatprep.subr.mxu0 0.0
    %1724 = vmatpush1.msra.mxu0 0.0
    %1725 = vmatprep.subr.mxu0 0.0
    %1726 = vmatpush1.msra.mxu0 0.0
    %1727 = vmatprep.subr.mxu0 0.0
    %1728 = vmatpush1.msra.mxu0 0.0
    %1729 = vmatprep.subr.mxu0 0.0
    %1730 = vmatpush1.msra.mxu0 0.0
    %1731 = vmatprep.subr.mxu0 0.0
    %1732 = vmatpush1.msra.mxu0 0.0
    %1733 = vmatprep.subr.mxu0 0.0
    %1734 = vmatpush1.msra.mxu0 0.0
    %1735 = vmatprep.subr.mxu0 0.0
    %1736 = vmatpush1.msra.mxu0 0.0
    %1737 = vmatprep.mubr.f32.mxu0 0.0
    %1738 = vmatmul.mubr.f32.gmra.mrb[0].mxu0 %v1668
    %v1739 = vpop.f32.mrb[0].mxu0
    %v1740 = vadd.f32 0.0, %v1739
    %v1741 = vpop.f32.mrb[0].mxu0
    %v1742 = vadd.f32 0.0, %v1741
    %1743 = vdwg.mxu0
    %1744 = vmatprep.subr.mxu0 0.0
    %1745 = vmatpush1.msra.mxu0 %v465
    %1746 = vmatprep.subr.mxu0 0.0
    %1747 = vmatpush1.msra.mxu0 %v468
    %1748 = vmatprep.subr.mxu0 0.0
    %1749 = vmatpush1.msra.mxu0 %v471
    %1750 = vmatprep.subr.mxu0 0.0
    %1751 = vmatpush1.msra.mxu0 %v474
    %1752 = vmatprep.subr.mxu0 0.0
    %1753 = vmatpush1.msra.mxu0 %v477
    %1754 = vmatprep.subr.mxu0 0.0
    %1755 = vmatpush1.msra.mxu0 %v480
    %1756 = vmatprep.subr.mxu0 0.0
    %1757 = vmatpush1.msra.mxu0 %v483
    %1758 = vmatprep.subr.mxu0 0.0
    %1759 = vmatpush1.msra.mxu0 %v486
    %1760 = vmatprep.subr.mxu0 0.0
    %1761 = vmatpush1.msra.mxu0 %v489
    %1762 = vmatprep.subr.mxu0 0.0
    %1763 = vmatpush1.msra.mxu0 %v492
    %1764 = vmatprep.subr.mxu0 0.0
    %1765 = vmatpush1.msra.mxu0 %v495
    %1766 = vmatprep.subr.mxu0 0.0
    %1767 = vmatpush1.msra.mxu0 %v498
    %1768 = vmatprep.subr.mxu0 0.0
    %1769 = vmatpush1.msra.mxu0 %v501
    %1770 = vmatprep.subr.mxu0 0.0
    %1771 = vmatpush1.msra.mxu0 %v504
    %1772 = vmatprep.subr.mxu0 0.0
    %1773 = vmatpush1.msra.mxu0 %v507
    %1774 = vmatprep.subr.mxu0 0.0
    %1775 = vmatpush1.msra.mxu0 %v510
    %1776 = vmatprep.subr.mxu0 0.0
    %1777 = vmatpush1.msra.mxu0 0.0
    %1778 = vmatprep.subr.mxu0 0.0
    %1779 = vmatpush1.msra.mxu0 0.0
    %1780 = vmatprep.subr.mxu0 0.0
    %1781 = vmatpush1.msra.mxu0 0.0
    %1782 = vmatprep.subr.mxu0 0.0
    %1783 = vmatpush1.msra.mxu0 0.0
    %1784 = vmatprep.subr.mxu0 0.0
    %1785 = vmatpush1.msra.mxu0 0.0
    %1786 = vmatprep.subr.mxu0 0.0
    %1787 = vmatpush1.msra.mxu0 0.0
    %1788 = vmatprep.subr.mxu0 0.0
    %1789 = vmatpush1.msra.mxu0 0.0
    %1790 = vmatprep.subr.mxu0 0.0
    %1791 = vmatpush1.msra.mxu0 0.0
    %1792 = vmatprep.subr.mxu0 0.0
    %1793 = vmatpush1.msra.mxu0 0.0
    %1794 = vmatprep.subr.mxu0 0.0
    %1795 = vmatpush1.msra.mxu0 0.0
    %1796 = vmatprep.subr.mxu0 0.0
    %1797 = vmatpush1.msra.mxu0 0.0
    %1798 = vmatprep.subr.mxu0 0.0
    %1799 = vmatpush1.msra.mxu0 0.0
    %1800 = vmatprep.subr.mxu0 0.0
    %1801 = vmatpush1.msra.mxu0 0.0
    %1802 = vmatprep.subr.mxu0 0.0
    %1803 = vmatpush1.msra.mxu0 0.0
    %1804 = vmatprep.subr.mxu0 0.0
    %1805 = vmatpush1.msra.mxu0 0.0
    %1806 = vmatprep.subr.mxu0 0.0
    %1807 = vmatpush1.msra.mxu0 0.0
    %1808 = vmatprep.mubr.f32.mxu0 0.0
    %1809 = vmatmul.mubr.f32.gmra.mrb[0].mxu0 %v1668
    %v1810 = vpop.f32.mrb[0].mxu0
    %v1811 = vadd.f32 0.0, %v1810
    %v1812 = vpop.f32.mrb[0].mxu0
    %1813 = vdwg.mxu0
    %v1814 = vadd.f32 %v1670, %v1740
    %v1815 = vxor.u32 %v1814, 2147483648
    %v1816 = vmul.f32 %v1815, 1.442695
    %v1817 = vpow.pop %v1816
    %v1818 = vadd.f32 %v1817, 1.0
    %v1819 = vrcp.pop %v1818
    %v1820 = vmul.f32 1.0, %v1819
    %v1821 = vadd.f32 %v1671, %v1742
    %v1822 = vxor.u32 %v1821, 2147483648
    %v1823 = vmul.f32 %v1822, 1.442695
    %v1824 = vpow.pop %v1823
    %v1825 = vadd.f32 %v1824, 1.0
    %v1826 = vrcp.pop %v1825
    %v1827 = vmul.f32 1.0, %v1826
    %v1828 = vadd.f32 %v1811, %v458
    %v1829 = vmul.f32 %v1820, %v1828
    %v1830 = vadd.f32 %v1672, %v1829
    %v1831 = vtanh.pop %v1830
    %v1832 = vsub.f32 %v1668, %v1831
    %v1833 = vmul.f32 %v1827, %v1832
    %v1834 = vadd.f32 %v1831, %v1833
    %v1835 = vld [vmem:[%s5] sm:$0xff]
    %v1836 = vld [vmem:[%s5 + $0x8] sm:$0xff]
    %v1837 = vld [vmem:[%s5 + $0x10] sm:$0xff]
    %v1838 = vld [vmem:[%s5 + $0x18] sm:$0xff]
    %v1839 = vld [vmem:[%s5 + $0x20] sm:$0xff]
    %v1840 = vld [vmem:[%s5 + $0x28] sm:$0xff]
    %v1841 = vld [vmem:[%s5 + $0x30] sm:$0xff]
    %v1842 = vld [vmem:[%s5 + $0x38] sm:$0xff]
    %v1843 = vld [vmem:[%s5 + $0x40] sm:$0xff]
    %v1844 = vld [vmem:[%s5 + $0x48] sm:$0xff]
    %v1845 = vld [vmem:[%s5 + $0x50] sm:$0xff]
    %v1846 = vld [vmem:[%s5 + $0x58] sm:$0xff]
    %v1847 = vld [vmem:[%s5 + $0x60] sm:$0xff]
    %v1848 = vld [vmem:[%s5 + $0x68] sm:$0xff]
    %v1849 = vld [vmem:[%s5 + $0x70] sm:$0xff]
    %v1850 = vld [vmem:[%s5 + $0x78] sm:$0xff]
    %v1851 = vld [vmem:[#allocation8] sm:$0x1]
    %v1853 = vlaneseq
    %v1854 = vshrl.u32 %v1853, 7
    %v1855 = vsub.s32 0, %v1854
    %v1856 = vrot.slane %v1851, %v1855
    %1858 = vmatprep.subr.mxu0 0.0
    %1859 = vmatpush1.msra.mxu0 %v1835
    %1860 = vmatprep.subr.mxu0 0.0
    %1861 = vmatpush1.msra.mxu0 %v1836
    %1862 = vmatprep.subr.mxu0 0.0
    %1863 = vmatpush1.msra.mxu0 %v1837
    %1864 = vmatprep.subr.mxu0 0.0
    %1865 = vmatpush1.msra.mxu0 %v1838
    %1866 = vmatprep.subr.mxu0 0.0
    %1867 = vmatpush1.msra.mxu0 %v1839
    %1868 = vmatprep.subr.mxu0 0.0
    %1869 = vmatpush1.msra.mxu0 %v1840
    %1870 = vmatprep.subr.mxu0 0.0
    %1871 = vmatpush1.msra.mxu0 %v1841
    %1872 = vmatprep.subr.mxu0 0.0
    %1873 = vmatpush1.msra.mxu0 %v1842
    %1874 = vmatprep.subr.mxu0 0.0
    %1875 = vmatpush1.msra.mxu0 %v1843
    %1876 = vmatprep.subr.mxu0 0.0
    %1877 = vmatpush1.msra.mxu0 %v1844
    %1878 = vmatprep.subr.mxu0 0.0
    %1879 = vmatpush1.msra.mxu0 %v1845
    %1880 = vmatprep.subr.mxu0 0.0
    %1881 = vmatpush1.msra.mxu0 %v1846
    %1882 = vmatprep.subr.mxu0 0.0
    %1883 = vmatpush1.msra.mxu0 %v1847
    %1884 = vmatprep.subr.mxu0 0.0
    %1885 = vmatpush1.msra.mxu0 %v1848
    %1886 = vmatprep.subr.mxu0 0.0
    %1887 = vmatpush1.msra.mxu0 %v1849
    %1888 = vmatprep.subr.mxu0 0.0
    %1889 = vmatpush1.msra.mxu0 %v1850
    %1890 = vmatprep.subr.mxu0 0.0
    %1891 = vmatpush1.msra.mxu0 0.0
    %1892 = vmatprep.subr.mxu0 0.0
    %1893 = vmatpush1.msra.mxu0 0.0
    %1894 = vmatprep.subr.mxu0 0.0
    %1895 = vmatpush1.msra.mxu0 0.0
    %1896 = vmatprep.subr.mxu0 0.0
    %1897 = vmatpush1.msra.mxu0 0.0
    %1898 = vmatprep.subr.mxu0 0.0
    %1899 = vmatpush1.msra.mxu0 0.0
    %1900 = vmatprep.subr.mxu0 0.0
    %1901 = vmatpush1.msra.mxu0 0.0
    %1902 = vmatprep.subr.mxu0 0.0
    %1903 = vmatpush1.msra.mxu0 0.0
    %1904 = vmatprep.subr.mxu0 0.0
    %1905 = vmatpush1.msra.mxu0 0.0
    %1906 = vmatprep.subr.mxu0 0.0
    %1907 = vmatpush1.msra.mxu0 0.0
    %1908 = vmatprep.subr.mxu0 0.0
    %1909 = vmatpush1.msra.mxu0 0.0
    %1910 = vmatprep.subr.mxu0 0.0
    %1911 = vmatpush1.msra.mxu0 0.0
    %1912 = vmatprep.subr.mxu0 0.0
    %1913 = vmatpush1.msra.mxu0 0.0
    %1914 = vmatprep.subr.mxu0 0.0
    %1915 = vmatpush1.msra.mxu0 0.0
    %1916 = vmatprep.subr.mxu0 0.0
    %1917 = vmatpush1.msra.mxu0 0.0
    %1918 = vmatprep.subr.mxu0 0.0
    %1919 = vmatpush1.msra.mxu0 0.0
    %1920 = vmatprep.subr.mxu0 0.0
    %1921 = vmatpush1.msra.mxu0 0.0
    %1922 = vmatprep.mubr.f32.mxu0 0.0
    %1923 = vmatmul.mubr.f32.gmra.mrb[0].mxu0 %v1834
    %v1924 = vpop.f32.mrb[0].mxu0
    %v1925 = vadd.f32 %v1856, %v1924
    %v1926 = vpop.f32.mrb[0].mxu0
    %1927 = vdwg.mxu0
    %v1928 = vmax.f32 %v1925, 0.0
    %v1929 = vld [vmem:[%s7] sm:$0xff]
    %v1930 = vld [vmem:[%s7 + $0x8] sm:$0xff]
    %v1931 = vld [vmem:[%s7 + $0x10] sm:$0xff]
    %v1932 = vld [vmem:[%s7 + $0x18] sm:$0xff]
    %v1933 = vld [vmem:[%s7 + $0x20] sm:$0xff]
    %v1934 = vld [vmem:[%s7 + $0x28] sm:$0xff]
    %v1935 = vld [vmem:[%s7 + $0x30] sm:$0xff]
    %v1936 = vld [vmem:[%s7 + $0x38] sm:$0xff]
    %v1937 = vld [vmem:[%s7 + $0x40] sm:$0xff]
    %v1938 = vld [vmem:[%s7 + $0x48] sm:$0xff]
    %v1939 = vld [vmem:[%s7 + $0x50] sm:$0xff]
    %v1940 = vld [vmem:[%s7 + $0x58] sm:$0xff]
    %v1941 = vld [vmem:[%s7 + $0x60] sm:$0xff]
    %v1942 = vld [vmem:[%s7 + $0x68] sm:$0xff]
    %v1943 = vld [vmem:[%s7 + $0x70] sm:$0xff]
    %v1944 = vld [vmem:[%s7 + $0x78] sm:$0xff]
    %v1945 = vld [vmem:[#allocation10] sm:$0x1]
    %v1947 = vlaneseq
    %v1948 = vshrl.u32 %v1947, 7
    %v1949 = vsub.s32 0, %v1948
    %v1950 = vrot.slane %v1945, %v1949
    %1952 = vmatprep.subr.mxu0 0.0
    %1953 = vmatpush1.msra.mxu0 %v1929
    %1954 = vmatprep.subr.mxu0 0.0
    %1955 = vmatpush1.msra.mxu0 %v1930
    %1956 = vmatprep.subr.mxu0 0.0
    %1957 = vmatpush1.msra.mxu0 %v1931
    %1958 = vmatprep.subr.mxu0 0.0
    %1959 = vmatpush1.msra.mxu0 %v1932
    %1960 = vmatprep.subr.mxu0 0.0
    %1961 = vmatpush1.msra.mxu0 %v1933
    %1962 = vmatprep.subr.mxu0 0.0
    %1963 = vmatpush1.msra.mxu0 %v1934
    %1964 = vmatprep.subr.mxu0 0.0
    %1965 = vmatpush1.msra.mxu0 %v1935
    %1966 = vmatprep.subr.mxu0 0.0
    %1967 = vmatpush1.msra.mxu0 %v1936
    %1968 = vmatprep.subr.mxu0 0.0
    %1969 = vmatpush1.msra.mxu0 %v1937
    %1970 = vmatprep.subr.mxu0 0.0
    %1971 = vmatpush1.msra.mxu0 %v1938
    %1972 = vmatprep.subr.mxu0 0.0
    %1973 = vmatpush1.msra.mxu0 %v1939
    %1974 = vmatprep.subr.mxu0 0.0
    %1975 = vmatpush1.msra.mxu0 %v1940
    %1976 = vmatprep.subr.mxu0 0.0
    %1977 = vmatpush1.msra.mxu0 %v1941
    %1978 = vmatprep.subr.mxu0 0.0
    %1979 = vmatpush1.msra.mxu0 %v1942
    %1980 = vmatprep.subr.mxu0 0.0
    %1981 = vmatpush1.msra.mxu0 %v1943
    %1982 = vmatprep.subr.mxu0 0.0
    %1983 = vmatpush1.msra.mxu0 %v1944
    %1984 = vmatprep.subr.mxu0 0.0
    %1985 = vmatpush1.msra.mxu0 0.0
    %1986 = vmatprep.subr.mxu0 0.0
    %1987 = vmatpush1.msra.mxu0 0.0
    %1988 = vmatprep.subr.mxu0 0.0
    %1989 = vmatpush1.msra.mxu0 0.0
    %1990 = vmatprep.subr.mxu0 0.0
    %1991 = vmatpush1.msra.mxu0 0.0
    %1992 = vmatprep.subr.mxu0 0.0
    %1993 = vmatpush1.msra.mxu0 0.0
    %1994 = vmatprep.subr.mxu0 0.0
    %1995 = vmatpush1.msra.mxu0 0.0
    %1996 = vmatprep.subr.mxu0 0.0
    %1997 = vmatpush1.msra.mxu0 0.0
    %1998 = vmatprep.subr.mxu0 0.0
    %1999 = vmatpush1.msra.mxu0 0.0
    %2000 = vmatprep.subr.mxu0 0.0
    %2001 = vmatpush1.msra.mxu0 0.0
    %2002 = vmatprep.subr.mxu0 0.0
    %2003 = vmatpush1.msra.mxu0 0.0
    %2004 = vmatprep.subr.mxu0 0.0
    %2005 = vmatpush1.msra.mxu0 0.0
    %2006 = vmatprep.subr.mxu0 0.0
    %2007 = vmatpush1.msra.mxu0 0.0
    %2008 = vmatprep.subr.mxu0 0.0
    %2009 = vmatpush1.msra.mxu0 0.0
    %2010 = vmatprep.subr.mxu0 0.0
    %2011 = vmatpush1.msra.mxu0 0.0
    %2012 = vmatprep.subr.mxu0 0.0
    %2013 = vmatpush1.msra.mxu0 0.0
    %2014 = vmatprep.subr.mxu0 0.0
    %2015 = vmatpush1.msra.mxu0 0.0
    %2016 = vmatprep.mubr.f32.mxu0 0.0
    %2017 = vmatmul.mubr.f32.gmra.mrb[0].mxu0 %v1928
    %v2018 = vpop.f32.mrb[0].mxu0
    %v2019 = vadd.f32 %v1950, %v2018
    %v2020 = vpop.f32.mrb[0].mxu0
    %2021 = vdwg.mxu0
    %v2022 = vmax.f32 %v2019, 0.0
    %v2023 = vld [vmem:[%s9] sm:$0xff]
    %v2024 = vld [vmem:[%s9 + $0x8] sm:$0xff]
    %v2025 = vld [vmem:[%s9 + $0x10] sm:$0xff]
    %v2026 = vld [vmem:[%s9 + $0x18] sm:$0xff]
    %v2027 = vld [vmem:[%s9 + $0x20] sm:$0xff]
    %v2028 = vld [vmem:[%s9 + $0x28] sm:$0xff]
    %v2029 = vld [vmem:[%s9 + $0x30] sm:$0xff]
    %v2030 = vld [vmem:[%s9 + $0x38] sm:$0xff]
    %v2031 = vld [vmem:[#allocation11] sm:$0x1]
    %v2033 = vlaneseq
    %v2034 = vshrl.u32 %v2033, 7
    %v2035 = vsub.s32 0, %v2034
    %v2036 = vrot.slane %v2031, %v2035
    %vm2038 = vcmask 523264
    %v2040 = vsel %vm2038, %v2022, 0
    %2042 = vmatprep.subr.mxu0 0.0
    %2043 = vmatpush1.msra.mxu0 %v2023
    %2044 = vmatprep.subr.mxu0 0.0
    %2045 = vmatpush1.msra.mxu0 %v2024
    %2046 = vmatprep.subr.mxu0 0.0
    %2047 = vmatpush1.msra.mxu0 %v2025
    %2048 = vmatprep.subr.mxu0 0.0
    %2049 = vmatpush1.msra.mxu0 %v2026
    %2050 = vmatprep.subr.mxu0 0.0
    %2051 = vmatpush1.msra.mxu0 %v2027
    %2052 = vmatprep.subr.mxu0 0.0
    %2053 = vmatpush1.msra.mxu0 %v2028
    %2054 = vmatprep.subr.mxu0 0.0
    %2055 = vmatpush1.msra.mxu0 %v2029
    %2056 = vmatprep.subr.mxu0 0.0
    %2057 = vmatpush1.msra.mxu0 %v2030
    %2058 = vmatprep.subr.mxu0 0.0
    %2059 = vmatpush1.msra.mxu0 0.0
    %2060 = vmatprep.subr.mxu0 0.0
    %2061 = vmatpush1.msra.mxu0 0.0
    %2062 = vmatprep.subr.mxu0 0.0
    %2063 = vmatpush1.msra.mxu0 0.0
    %2064 = vmatprep.subr.mxu0 0.0
    %2065 = vmatpush1.msra.mxu0 0.0
    %2066 = vmatprep.subr.mxu0 0.0
    %2067 = vmatpush1.msra.mxu0 0.0
    %2068 = vmatprep.subr.mxu0 0.0
    %2069 = vmatpush1.msra.mxu0 0.0
    %2070 = vmatprep.subr.mxu0 0.0
    %2071 = vmatpush1.msra.mxu0 0.0
    %2072 = vmatprep.subr.mxu0 0.0
    %2073 = vmatpush1.msra.mxu0 0.0
    %2074 = vmatprep.subr.mxu0 0.0
    %2075 = vmatpush1.msra.mxu0 0.0
    %2076 = vmatprep.subr.mxu0 0.0
    %2077 = vmatpush1.msra.mxu0 0.0
    %2078 = vmatprep.subr.mxu0 0.0
    %2079 = vmatpush1.msra.mxu0 0.0
    %2080 = vmatprep.subr.mxu0 0.0
    %2081 = vmatpush1.msra.mxu0 0.0
    %2082 = vmatprep.subr.mxu0 0.0
    %2083 = vmatpush1.msra.mxu0 0.0
    %2084 = vmatprep.subr.mxu0 0.0
    %2085 = vmatpush1.msra.mxu0 0.0
    %2086 = vmatprep.subr.mxu0 0.0
    %2087 = vmatpush1.msra.mxu0 0.0
    %2088 = vmatprep.subr.mxu0 0.0
    %2089 = vmatpush1.msra.mxu0 0.0
    %2090 = vmatprep.subr.mxu0 0.0
    %2091 = vmatpush1.msra.mxu0 0.0
    %2092 = vmatprep.subr.mxu0 0.0
    %2093 = vmatpush1.msra.mxu0 0.0
    %2094 = vmatprep.subr.mxu0 0.0
    %2095 = vmatpush1.msra.mxu0 0.0
    %2096 = vmatprep.subr.mxu0 0.0
    %2097 = vmatpush1.msra.mxu0 0.0
    %2098 = vmatprep.subr.mxu0 0.0
    %2099 = vmatpush1.msra.mxu0 0.0
    %2100 = vmatprep.subr.mxu0 0.0
    %2101 = vmatpush1.msra.mxu0 0.0
    %2102 = vmatprep.subr.mxu0 0.0
    %2103 = vmatpush1.msra.mxu0 0.0
    %2104 = vmatprep.subr.mxu0 0.0
    %2105 = vmatpush1.msra.mxu0 0.0
    %2106 = vmatprep.mubr.f32.mxu0 0.0
    %2107 = vmatmul.mubr.f32.gmra.mrb[0].mxu0 %v2040
    %v2108 = vpop.f32.mrb[0].mxu0
    %v2109 = vadd.f32 %v2036, %v2108
    %v2110 = vpop.f32.mrb[0].mxu0
    %2111 = vdwg.mxu0
    %v2112 = vmax.f32 %v2109, 0.0
    %v2113 = vld [vmem:[%s11] sm:$0xff]
    %v2114 = vld [vmem:[%s11 + $0x8] sm:$0xff]
    %v2115 = vld [vmem:[%s11 + $0x10] sm:$0xff]
    %v2116 = vld [vmem:[%s11 + $0x18] sm:$0xff]
    %v2117 = vld [vmem:[#allocation13] sm:$0x1]
    %v2119 = vlaneseq
    %v2120 = vshrl.u32 %v2119, 7
    %v2121 = vsub.s32 0, %v2120
    %v2122 = vrot.slane %v2117, %v2121
    %vm2124 = vcmask 261120
    %v2126 = vsel %vm2124, %v2112, 0
    %2128 = vmatprep.subr.mxu0 0.0
    %2129 = vmatpush1.msra.mxu0 %v2113
    %2130 = vmatprep.subr.mxu0 0.0
    %2131 = vmatpush1.msra.mxu0 %v2114
    %2132 = vmatprep.subr.mxu0 0.0
    %2133 = vmatpush1.msra.mxu0 %v2115
    %2134 = vmatprep.subr.mxu0 0.0
    %2135 = vmatpush1.msra.mxu0 %v2116
    %2136 = vmatprep.subr.mxu0 0.0
    %2137 = vmatpush1.msra.mxu0 0.0
    %2138 = vmatprep.subr.mxu0 0.0
    %2139 = vmatpush1.msra.mxu0 0.0
    %2140 = vmatprep.subr.mxu0 0.0
    %2141 = vmatpush1.msra.mxu0 0.0
    %2142 = vmatprep.subr.mxu0 0.0
    %2143 = vmatpush1.msra.mxu0 0.0
    %2144 = vmatprep.subr.mxu0 0.0
    %2145 = vmatpush1.msra.mxu0 0.0
    %2146 = vmatprep.subr.mxu0 0.0
    %2147 = vmatpush1.msra.mxu0 0.0
    %2148 = vmatprep.subr.mxu0 0.0
    %2149 = vmatpush1.msra.mxu0 0.0
    %2150 = vmatprep.subr.mxu0 0.0
    %2151 = vmatpush1.msra.mxu0 0.0
    %2152 = vmatprep.subr.mxu0 0.0
    %2153 = vmatpush1.msra.mxu0 0.0
    %2154 = vmatprep.subr.mxu0 0.0
    %2155 = vmatpush1.msra.mxu0 0.0
    %2156 = vmatprep.subr.mxu0 0.0
    %2157 = vmatpush1.msra.mxu0 0.0
    %2158 = vmatprep.subr.mxu0 0.0
    %2159 = vmatpush1.msra.mxu0 0.0
    %2160 = vmatprep.subr.mxu0 0.0
    %2161 = vmatpush1.msra.mxu0 0.0
    %2162 = vmatprep.subr.mxu0 0.0
    %2163 = vmatpush1.msra.mxu0 0.0
    %2164 = vmatprep.subr.mxu0 0.0
    %2165 = vmatpush1.msra.mxu0 0.0
    %2166 = vmatprep.subr.mxu0 0.0
    %2167 = vmatpush1.msra.mxu0 0.0
    %2168 = vmatprep.subr.mxu0 0.0
    %2169 = vmatpush1.msra.mxu0 0.0
    %2170 = vmatprep.subr.mxu0 0.0
    %2171 = vmatpush1.msra.mxu0 0.0
    %2172 = vmatprep.subr.mxu0 0.0
    %2173 = vmatpush1.msra.mxu0 0.0
    %2174 = vmatprep.subr.mxu0 0.0
    %2175 = vmatpush1.msra.mxu0 0.0
    %2176 = vmatprep.subr.mxu0 0.0
    %2177 = vmatpush1.msra.mxu0 0.0
    %2178 = vmatprep.subr.mxu0 0.0
    %2179 = vmatpush1.msra.mxu0 0.0
    %2180 = vmatprep.subr.mxu0 0.0
    %2181 = vmatpush1.msra.mxu0 0.0
    %2182 = vmatprep.subr.mxu0 0.0
    %2183 = vmatpush1.msra.mxu0 0.0
    %2184 = vmatprep.subr.mxu0 0.0
    %2185 = vmatpush1.msra.mxu0 0.0
    %2186 = vmatprep.subr.mxu0 0.0
    %2187 = vmatpush1.msra.mxu0 0.0
    %2188 = vmatprep.subr.mxu0 0.0
    %2189 = vmatpush1.msra.mxu0 0.0
    %2190 = vmatprep.subr.mxu0 0.0
    %2191 = vmatpush1.msra.mxu0 0.0
    %2192 = vmatprep.mubr.f32.mxu0 0.0
    %2193 = vmatmul.mubr.f32.gmra.mrb[0].mxu0 %v2126
    %v2194 = vpop.f32.mrb[0].mxu0
    %v2195 = vadd.f32 %v2122, %v2194
    %v2196 = vpop.f32.mrb[0].mxu0
    %2197 = vdwg.mxu0
    %v2198 = vmax.f32 %v2195, 0.0
    %v2199 = vld [vmem:[%s13] sm:$0xff]
    %v2200 = vld [vmem:[%s13 + $0x8] sm:$0xff]
    %v2201 = vld [vmem:[#allocation14] sm:$0x1]
    %v2203 = vlaneseq
    %v2204 = vshrl.u32 %v2203, 7
    %v2205 = vsub.s32 0, %v2204
    %v2206 = vrot.slane %v2201, %v2205
    %vm2208 = vcmask 130048
    %v2210 = vsel %vm2208, %v2198, 0
    %2212 = vmatprep.subr.mxu0 0.0
    %2213 = vmatpush1.msra.mxu0 %v2199
    %2214 = vmatprep.subr.mxu0 0.0
    %2215 = vmatpush1.msra.mxu0 %v2200
    %2216 = vmatprep.subr.mxu0 0.0
    %2217 = vmatpush1.msra.mxu0 0.0
    %2218 = vmatprep.subr.mxu0 0.0
    %2219 = vmatpush1.msra.mxu0 0.0
    %2220 = vmatprep.subr.mxu0 0.0
    %2221 = vmatpush1.msra.mxu0 0.0
    %2222 = vmatprep.subr.mxu0 0.0
    %2223 = vmatpush1.msra.mxu0 0.0
    %2224 = vmatprep.subr.mxu0 0.0
    %2225 = vmatpush1.msra.mxu0 0.0
    %2226 = vmatprep.subr.mxu0 0.0
    %2227 = vmatpush1.msra.mxu0 0.0
    %2228 = vmatprep.subr.mxu0 0.0
    %2229 = vmatpush1.msra.mxu0 0.0
    %2230 = vmatprep.subr.mxu0 0.0
    %2231 = vmatpush1.msra.mxu0 0.0
    %2232 = vmatprep.subr.mxu0 0.0
    %2233 = vmatpush1.msra.mxu0 0.0
    %2234 = vmatprep.subr.mxu0 0.0
    %2235 = vmatpush1.msra.mxu0 0.0
    %2236 = vmatprep.subr.mxu0 0.0
    %2237 = vmatpush1.msra.mxu0 0.0
    %2238 = vmatprep.subr.mxu0 0.0
    %2239 = vmatpush1.msra.mxu0 0.0
    %2240 = vmatprep.subr.mxu0 0.0
    %2241 = vmatpush1.msra.mxu0 0.0
    %2242 = vmatprep.subr.mxu0 0.0
    %2243 = vmatpush1.msra.mxu0 0.0
    %2244 = vmatprep.subr.mxu0 0.0
    %2245 = vmatpush1.msra.mxu0 0.0
    %2246 = vmatprep.subr.mxu0 0.0
    %2247 = vmatpush1.msra.mxu0 0.0
    %2248 = vmatprep.subr.mxu0 0.0
    %2249 = vmatpush1.msra.mxu0 0.0
    %2250 = vmatprep.subr.mxu0 0.0
    %2251 = vmatpush1.msra.mxu0 0.0
    %2252 = vmatprep.subr.mxu0 0.0
    %2253 = vmatpush1.msra.mxu0 0.0
    %2254 = vmatprep.subr.mxu0 0.0
    %2255 = vmatpush1.msra.mxu0 0.0
    %2256 = vmatprep.subr.mxu0 0.0
    %2257 = vmatpush1.msra.mxu0 0.0
    %2258 = vmatprep.subr.mxu0 0.0
    %2259 = vmatpush1.msra.mxu0 0.0
    %2260 = vmatprep.subr.mxu0 0.0
    %2261 = vmatpush1.msra.mxu0 0.0
    %2262 = vmatprep.subr.mxu0 0.0
    %2263 = vmatpush1.msra.mxu0 0.0
    %2264 = vmatprep.subr.mxu0 0.0
    %2265 = vmatpush1.msra.mxu0 0.0
    %2266 = vmatprep.subr.mxu0 0.0
    %2267 = vmatpush1.msra.mxu0 0.0
    %2268 = vmatprep.subr.mxu0 0.0
    %2269 = vmatpush1.msra.mxu0 0.0
    %2270 = vmatprep.subr.mxu0 0.0
    %2271 = vmatpush1.msra.mxu0 0.0
    %2272 = vmatprep.subr.mxu0 0.0
    %2273 = vmatpush1.msra.mxu0 0.0
    %2274 = vmatprep.subr.mxu0 0.0
    %2275 = vmatpush1.msra.mxu0 0.0
    %2276 = vmatprep.mubr.f32.mxu0 0.0
    %2277 = vmatmul.mubr.f32.gmra.mrb[0].mxu0 %v2210
    %v2278 = vpop.f32.mrb[0].mxu0
    %v2279 = vadd.f32 %v2206, %v2278
    %v2280 = vpop.f32.mrb[0].mxu0
    %2281 = vdwg.mxu0
    %2282 = vst [vmem:[%s15] sm:$0xff] %v2279
    // Predicated region
    $region94: #{player_classify_forward.1} parent=1 // pred_check
      _
    $region95: #{player_classify_forward.1} parent=1 // pred_check_branch
      %2284 = sbr.rel (0) target = $region97
    $region96: #{player_classify_forward.1} parent=1 // pred_region
      _
    $region97: #{player_classify_forward.1} parent=1 // pred_fallthru
      _
    // Predicated region
    $region98: #{player_classify_forward.1} parent=1 // pred_check
      _
    $region99: #{player_classify_forward.1} parent=1 // pred_check_branch
      %2286 = sbr.rel (0) target = $region101
    $region100: #{player_classify_forward.1} parent=1 // pred_region
      _
    $region101: #{player_classify_forward.1} parent=1 // pred_fallthru
      _
    %2287 = vsyncpa [#allocation4], 1
    %2288 = vsyncpa [#allocation6], 1
    %2289 = vsyncpa [#allocation9], 1
    %2290 = vsyncpa [#allocation12], 1
    %2291 = vsyncpa [#allocation15], 1

</llo_original>
